<compile_context>
chip_gen: v6e
topology: v6e:2x2x1
jax: 0.10.0
libtpu: 0.0.40
codegen_flags: <defaults>
</compile_context>

<pallas_src>
import functools

import jax
import jax.numpy as jnp
import numpy as np
from jax.experimental import pallas as pl


# ----------------------------------------------------------------------------
# Pallas kernel: full 2-layer LSTM recurrence + Linear head in one invocation.
# ----------------------------------------------------------------------------
def _predict_cases_kernel(x_ref, wih0_ref, b0_ref, whh0_ref,
                          wih1_ref, whh1_ref, b1_ref,
                          wlin_ref, blin_ref, out_ref, *, seq_len, hidden_dim):
    H = hidden_dim
    B = seq_len                      # LSTM batch dim (== seq_len by construction)
    T = x_ref.shape[0] // B          # time steps (== len(sequences))

    # Layer-0 input projection for all time steps in one MXU op:
    #   (T*B, F) @ (F, 4H) + b0  ->  (T*B, 4H), lane-dense (4H = 128).
    xproj = (jnp.dot(x_ref[...], wih0_ref[...],
                     preferred_element_type=jnp.float32) + b0_ref[...])

    whh0 = whh0_ref[...]             # (H, 4H)
    wih1 = wih1_ref[...]             # (H, 4H)
    whh1 = whh1_ref[...]             # (H, 4H)
    b1 = b1_ref[...]                 # (1, 4H)

    def lstm_cell(gates, c_prev):
        # Full-width activations over the (B, 4H) = (8, 128) vreg, then slice.
        sig = jax.nn.sigmoid(gates)
        tg = jnp.tanh(gates)
        i = sig[:, 0:H]
        f = sig[:, H:2 * H]
        g = tg[:, 2 * H:3 * H]
        o = sig[:, 3 * H:4 * H]
        c_new = f * c_prev + i * g
        h_new = o * jnp.tanh(c_new)
        return h_new, c_new

    z = jnp.zeros((B, H), jnp.float32)
    h0, c0, h1, c1 = z, z, z, z

    # T is small & static: fully unroll at trace time (scheduler sees everything).
    for t in range(T):
        g0 = xproj[t * B:(t + 1) * B, :]
        if t > 0:  # initial hidden state is zero -> h @ Whh contributes nothing at t=0
            g0 = g0 + jnp.dot(h0, whh0, preferred_element_type=jnp.float32)
        h0, c0 = lstm_cell(g0, c0)

        # TODO(synk): nn.LSTM inter-layer dropout(p=0.6) applies only in training
        # mode; eval-mode forward (implemented here) skips it.
        g1 = jnp.dot(h0, wih1, preferred_element_type=jnp.float32) + b1
        if t > 0:
            g1 = g1 + jnp.dot(h1, whh1, preferred_element_type=jnp.float32)
        h1, c1 = lstm_cell(g1, c1)

    # Fused Linear(hidden_dim -> 1) head on the final top-layer hidden state.
    # (B, H) * (1, H) -> lane-reduce -> (B, 1); single (masked) store of the run.
    out_ref[...] = (jnp.sum(h1 * wlin_ref[...], axis=1, keepdims=True)
                    + blin_ref[...])


# ----------------------------------------------------------------------------
# Wrappers
# ----------------------------------------------------------------------------
def run_predict_cases(x2d, wih0_t, b0, whh0_t, wih1_t, whh1_t, b1,
                      w_lin, b_lin, *, batch, seq_len, hidden_dim):
    """x2d: (T*B, F) = (len(sequences)*seq_len, F). All operands are tiny and
    live entirely in VMEM (no grid, no pipelining needed)."""
    kernel = functools.partial(_predict_cases_kernel,
                               seq_len=seq_len, hidden_dim=hidden_dim)
    return pl.pallas_call(
        kernel,
        out_shape=jax.ShapeDtypeStruct((batch, 1), jnp.float32),
    )(x2d, wih0_t, b0, whh0_t, wih1_t, whh1_t, b1, w_lin, b_lin)


def init_params(key, n_features, hidden_dim):
    """Deterministic init mirroring PyTorch uniform(-1/sqrt(H), 1/sqrt(H))."""
    H = hidden_dim
    k = 1.0 / np.sqrt(H)
    keys = jax.random.split(key, 10)
    u = lambda kk, shape: jax.random.uniform(kk, shape, jnp.float32, -k, k)
    return {
        "wih0": u(keys[0], (4 * H, n_features)),
        "whh0": u(keys[1], (4 * H, H)),
        "bih0": u(keys[2], (4 * H,)),
        "bhh0": u(keys[3], (4 * H,)),
        "wih1": u(keys[4], (4 * H, H)),
        "whh1": u(keys[5], (4 * H, H)),
        "bih1": u(keys[6], (4 * H,)),
        "bhh1": u(keys[7], (4 * H,)),
        "w_lin": u(keys[8], (1, H)),
        "b_lin": u(keys[9], (1,)),
    }


@functools.partial(jax.jit, static_argnames=("seq_len", "hidden_dim"))
def predict_cases_forward(sequences, params, *, seq_len, hidden_dim):
    """Mirrors Predict_Cases.forward (after restart_hid_dim())."""
    N = sequences.shape[0]
    # The fused kernel exploits lstm_out.view(seq_len, N, H)[-1] == h1[T-1],
    # which holds for the module's intended usage len(sequences) == seq_len.
    # TODO(synk): general N != seq_len path (the quirky reshape then mixes time
    # steps) is not implemented in the fused kernel.
    if N != seq_len:
        raise NotImplementedError("fused kernel assumes len(sequences) == seq_len")

    x2d = sequences.reshape(N * seq_len, -1).astype(jnp.float32)   # (T*B, F)

    wih0_t = params["wih0"].T                                      # (F, 4H)
    whh0_t = params["whh0"].T                                      # (H, 4H)
    b0 = (params["bih0"] + params["bhh0"])[None, :]                # (1, 4H)
    wih1_t = params["wih1"].T                                      # (H, 4H)
    whh1_t = params["whh1"].T                                      # (H, 4H)
    b1 = (params["bih1"] + params["bhh1"])[None, :]                # (1, 4H)
    w_lin = params["w_lin"]                                        # (1, H)
    b_lin = params["b_lin"][None, :]                               # (1, 1)

    return run_predict_cases(x2d, wih0_t, b0, whh0_t, wih1_t, whh1_t, b1,
                             w_lin, b_lin,
                             batch=N, seq_len=seq_len, hidden_dim=hidden_dim)


# ----------------------------------------------------------------------------
# Pure-JAX reference (PyTorch semantics) for a sanity check
# ----------------------------------------------------------------------------
def _reference_forward(sequences, params, seq_len, hidden_dim):
    N = sequences.shape[0]
    H = hidden_dim
    x = sequences.reshape(N, seq_len, -1).astype(jnp.float32)      # (T, B, F)

    def cell(x_in, h, c, wih, whh, bih, bhh):
        gates = x_in @ wih.T + h @ whh.T + bih + bhh
        i = jax.nn.sigmoid(gates[:, 0:H])
        f = jax.nn.sigmoid(gates[:, H:2 * H])
        g = jnp.tanh(gates[:, 2 * H:3 * H])
        o = jax.nn.sigmoid(gates[:, 3 * H:4 * H])
        c_new = f * c + i * g
        return o * jnp.tanh(c_new), c_new

    def step(carry, x_t):
        h0, c0, h1, c1 = carry
        h0, c0 = cell(x_t, h0, c0, params["wih0"], params["whh0"],
                      params["bih0"], params["bhh0"])
        h1, c1 = cell(h0, h1, c1, params["wih1"], params["whh1"],
                      params["bih1"], params["bhh1"])
        return (h0, c0, h1, c1), h1

    z = jnp.zeros((seq_len, H), jnp.float32)
    _, lstm_out = jax.lax.scan(step, (z, z, z, z), x)               # (T, B, H)
    last = lstm_out.reshape(seq_len, N, H)[-1]
    return last @ params["w_lin"].T + params["b_lin"]


# ----------------------------------------------------------------------------
if __name__ == "__main__":
    n_features = 4
    hidden_dim = 32
    seq_len = 8
    batch = 8  # len(sequences); equals seq_len per the module's intended usage

    key = jax.random.PRNGKey(0)
    k_data, k_params = jax.random.split(key)
    sequences = jax.random.normal(k_data, (batch, seq_len, n_features), jnp.float32)
    params = init_params(k_params, n_features, hidden_dim)

    pred = predict_cases_forward(sequences, params,
                                 seq_len=seq_len, hidden_dim=hidden_dim)
    pred = jax.block_until_ready(pred)

    assert pred.shape == (batch, 1), pred.shape

    ref = np.asarray(_reference_forward(sequences, params, seq_len, hidden_dim))
    if not np.allclose(np.asarray(pred), ref, rtol=3e-2, atol=3e-2):
        raise AssertionError("Pallas LSTM output mismatch vs JAX reference")

    print("KERNEL_OK")
</pallas_src>

<mosaic_0001>
module attributes {stable_mosaic.version = 11 : i64} {
  func.func @_predict_cases_kernel(%arg0: memref<64x4xf32, #tpu.memory_space<vmem>>, %arg1: memref<4x128xf32, #tpu.memory_space<vmem>>, %arg2: memref<1x128xf32, #tpu.memory_space<vmem>>, %arg3: memref<32x128xf32, #tpu.memory_space<vmem>>, %arg4: memref<32x128xf32, #tpu.memory_space<vmem>>, %arg5: memref<32x128xf32, #tpu.memory_space<vmem>>, %arg6: memref<1x128xf32, #tpu.memory_space<vmem>>, %arg7: memref<1x32xf32, #tpu.memory_space<vmem>>, %arg8: memref<1x1xf32, #tpu.memory_space<vmem>>, %arg9: memref<8x1xf32, #tpu.memory_space<vmem>>) attributes {dimension_semantics = [], scalar_prefetch = 0 : i64, scratch_operands = 0 : i64, tpu.core_type = #tpu.core_type<tc>} {
    %c0 = arith.constant 0 : index
    %c0_0 = arith.constant 0 : index
    %0 = vector.load %arg0[%c0, %c0_0] : memref<64x4xf32, #tpu.memory_space<vmem>>, vector<64x4xf32>
    %c0_1 = arith.constant 0 : index
    %c0_2 = arith.constant 0 : index
    %1 = vector.load %arg1[%c0_1, %c0_2] : memref<4x128xf32, #tpu.memory_space<vmem>>, vector<4x128xf32>
    %cst = arith.constant dense<0.000000e+00> : vector<64x128xf32>
    %2 = tpu.matmul %0, %1, %cst {dimension_numbers = #tpu.dot_dimension_numbers<[1], [0], [0], [1], [0, 0, 1, 1], [], []>} : vector<64x4xf32>, vector<4x128xf32>, vector<64x128xf32> -> vector<64x128xf32>
    %c0_3 = arith.constant 0 : index
    %c0_4 = arith.constant 0 : index
    %3 = vector.load %arg2[%c0_3, %c0_4] : memref<1x128xf32, #tpu.memory_space<vmem>>, vector<1x128xf32>
    %4 = vector.broadcast %3 : vector<1x128xf32> to vector<64x128xf32>
    %5 = arith.addf %2, %4 : vector<64x128xf32>
    %c0_5 = arith.constant 0 : index
    %c0_6 = arith.constant 0 : index
    %6 = vector.load %arg3[%c0_5, %c0_6] : memref<32x128xf32, #tpu.memory_space<vmem>>, vector<32x128xf32>
    %c0_7 = arith.constant 0 : index
    %c0_8 = arith.constant 0 : index
    %7 = vector.load %arg4[%c0_7, %c0_8] : memref<32x128xf32, #tpu.memory_space<vmem>>, vector<32x128xf32>
    %c0_9 = arith.constant 0 : index
    %c0_10 = arith.constant 0 : index
    %8 = vector.load %arg5[%c0_9, %c0_10] : memref<32x128xf32, #tpu.memory_space<vmem>>, vector<32x128xf32>
    %c0_11 = arith.constant 0 : index
    %c0_12 = arith.constant 0 : index
    %9 = vector.load %arg6[%c0_11, %c0_12] : memref<1x128xf32, #tpu.memory_space<vmem>>, vector<1x128xf32>
    %cst_13 = arith.constant 0.000000e+00 : f32
    %10 = vector.broadcast %cst_13 : f32 to vector<8x32xf32>
    %11 = vector.extract_strided_slice %5 {offsets = [0, 0], sizes = [8, 128], strides = [1, 1]} : vector<64x128xf32> to vector<8x128xf32>
    %12 = arith.negf %11 : vector<8x128xf32>
    %13 = math.exp %12 : vector<8x128xf32>
    %cst_14 = arith.constant 1.000000e+00 : f32
    %14 = vector.broadcast %cst_14 : f32 to vector<8x128xf32>
    %15 = arith.addf %14, %13 : vector<8x128xf32>
    %16 = arith.divf %14, %15 : vector<8x128xf32>
    %17 = math.tanh %11 : vector<8x128xf32>
    %18 = vector.extract_strided_slice %16 {offsets = [0, 0], sizes = [8, 32], strides = [1, 1]} : vector<8x128xf32> to vector<8x32xf32>
    %19 = vector.extract_strided_slice %16 {offsets = [0, 32], sizes = [8, 32], strides = [1, 1]} : vector<8x128xf32> to vector<8x32xf32>
    %20 = vector.extract_strided_slice %17 {offsets = [0, 64], sizes = [8, 32], strides = [1, 1]} : vector<8x128xf32> to vector<8x32xf32>
    %21 = vector.extract_strided_slice %16 {offsets = [0, 96], sizes = [8, 32], strides = [1, 1]} : vector<8x128xf32> to vector<8x32xf32>
    %22 = arith.mulf %19, %10 : vector<8x32xf32>
    %23 = arith.mulf %18, %20 : vector<8x32xf32>
    %24 = arith.addf %22, %23 : vector<8x32xf32>
    %25 = math.tanh %24 : vector<8x32xf32>
    %26 = arith.mulf %21, %25 : vector<8x32xf32>
    %cst_15 = arith.constant dense<0.000000e+00> : vector<8x128xf32>
    %27 = tpu.matmul %26, %7, %cst_15 {dimension_numbers = #tpu.dot_dimension_numbers<[1], [0], [0], [1], [0, 0, 1, 1], [], []>} : vector<8x32xf32>, vector<32x128xf32>, vector<8x128xf32> -> vector<8x128xf32>
    %28 = vector.broadcast %9 : vector<1x128xf32> to vector<8x128xf32>
    %29 = arith.addf %27, %28 : vector<8x128xf32>
    %30 = arith.negf %29 : vector<8x128xf32>
    %31 = math.exp %30 : vector<8x128xf32>
    %cst_16 = arith.constant 1.000000e+00 : f32
    %32 = vector.broadcast %cst_16 : f32 to vector<8x128xf32>
    %33 = arith.addf %32, %31 : vector<8x128xf32>
    %34 = arith.divf %32, %33 : vector<8x128xf32>
    %35 = math.tanh %29 : vector<8x128xf32>
    %36 = vector.extract_strided_slice %34 {offsets = [0, 0], sizes = [8, 32], strides = [1, 1]} : vector<8x128xf32> to vector<8x32xf32>
    %37 = vector.extract_strided_slice %34 {offsets = [0, 32], sizes = [8, 32], strides = [1, 1]} : vector<8x128xf32> to vector<8x32xf32>
    %38 = vector.extract_strided_slice %35 {offsets = [0, 64], sizes = [8, 32], strides = [1, 1]} : vector<8x128xf32> to vector<8x32xf32>
    %39 = vector.extract_strided_slice %34 {offsets = [0, 96], sizes = [8, 32], strides = [1, 1]} : vector<8x128xf32> to vector<8x32xf32>
    %40 = arith.mulf %37, %10 : vector<8x32xf32>
    %41 = arith.mulf %36, %38 : vector<8x32xf32>
    %42 = arith.addf %40, %41 : vector<8x32xf32>
    %43 = math.tanh %42 : vector<8x32xf32>
    %44 = arith.mulf %39, %43 : vector<8x32xf32>
    %45 = vector.extract_strided_slice %5 {offsets = [8, 0], sizes = [8, 128], strides = [1, 1]} : vector<64x128xf32> to vector<8x128xf32>
    %cst_17 = arith.constant dense<0.000000e+00> : vector<8x128xf32>
    %46 = tpu.matmul %26, %6, %cst_17 {dimension_numbers = #tpu.dot_dimension_numbers<[1], [0], [0], [1], [0, 0, 1, 1], [], []>} : vector<8x32xf32>, vector<32x128xf32>, vector<8x128xf32> -> vector<8x128xf32>
    %47 = arith.addf %45, %46 : vector<8x128xf32>
    %48 = arith.negf %47 : vector<8x128xf32>
    %49 = math.exp %48 : vector<8x128xf32>
    %cst_18 = arith.constant 1.000000e+00 : f32
    %50 = vector.broadcast %cst_18 : f32 to vector<8x128xf32>
    %51 = arith.addf %50, %49 : vector<8x128xf32>
    %52 = arith.divf %50, %51 : vector<8x128xf32>
    %53 = math.tanh %47 : vector<8x128xf32>
    %54 = vector.extract_strided_slice %52 {offsets = [0, 0], sizes = [8, 32], strides = [1, 1]} : vector<8x128xf32> to vector<8x32xf32>
    %55 = vector.extract_strided_slice %52 {offsets = [0, 32], sizes = [8, 32], strides = [1, 1]} : vector<8x128xf32> to vector<8x32xf32>
    %56 = vector.extract_strided_slice %53 {offsets = [0, 64], sizes = [8, 32], strides = [1, 1]} : vector<8x128xf32> to vector<8x32xf32>
    %57 = vector.extract_strided_slice %52 {offsets = [0, 96], sizes = [8, 32], strides = [1, 1]} : vector<8x128xf32> to vector<8x32xf32>
    %58 = arith.mulf %55, %24 : vector<8x32xf32>
    %59 = arith.mulf %54, %56 : vector<8x32xf32>
    %60 = arith.addf %58, %59 : vector<8x32xf32>
    %61 = math.tanh %60 : vector<8x32xf32>
    %62 = arith.mulf %57, %61 : vector<8x32xf32>
    %cst_19 = arith.constant dense<0.000000e+00> : vector<8x128xf32>
    %63 = tpu.matmul %62, %7, %cst_19 {dimension_numbers = #tpu.dot_dimension_numbers<[1], [0], [0], [1], [0, 0, 1, 1], [], []>} : vector<8x32xf32>, vector<32x128xf32>, vector<8x128xf32> -> vector<8x128xf32>
    %64 = vector.broadcast %9 : vector<1x128xf32> to vector<8x128xf32>
    %65 = arith.addf %63, %64 : vector<8x128xf32>
    %cst_20 = arith.constant dense<0.000000e+00> : vector<8x128xf32>
    %66 = tpu.matmul %44, %8, %cst_20 {dimension_numbers = #tpu.dot_dimension_numbers<[1], [0], [0], [1], [0, 0, 1, 1], [], []>} : vector<8x32xf32>, vector<32x128xf32>, vector<8x128xf32> -> vector<8x128xf32>
    %67 = arith.addf %65, %66 : vector<8x128xf32>
    %68 = arith.negf %67 : vector<8x128xf32>
    %69 = math.exp %68 : vector<8x128xf32>
    %cst_21 = arith.constant 1.000000e+00 : f32
    %70 = vector.broadcast %cst_21 : f32 to vector<8x128xf32>
    %71 = arith.addf %70, %69 : vector<8x128xf32>
    %72 = arith.divf %70, %71 : vector<8x128xf32>
    %73 = math.tanh %67 : vector<8x128xf32>
    %74 = vector.extract_strided_slice %72 {offsets = [0, 0], sizes = [8, 32], strides = [1, 1]} : vector<8x128xf32> to vector<8x32xf32>
    %75 = vector.extract_strided_slice %72 {offsets = [0, 32], sizes = [8, 32], strides = [1, 1]} : vector<8x128xf32> to vector<8x32xf32>
    %76 = vector.extract_strided_slice %73 {offsets = [0, 64], sizes = [8, 32], strides = [1, 1]} : vector<8x128xf32> to vector<8x32xf32>
    %77 = vector.extract_strided_slice %72 {offsets = [0, 96], sizes = [8, 32], strides = [1, 1]} : vector<8x128xf32> to vector<8x32xf32>
    %78 = arith.mulf %75, %42 : vector<8x32xf32>
    %79 = arith.mulf %74, %76 : vector<8x32xf32>
    %80 = arith.addf %78, %79 : vector<8x32xf32>
    %81 = math.tanh %80 : vector<8x32xf32>
    %82 = arith.mulf %77, %81 : vector<8x32xf32>
    %83 = vector.extract_strided_slice %5 {offsets = [16, 0], sizes = [8, 128], strides = [1, 1]} : vector<64x128xf32> to vector<8x128xf32>
    %cst_22 = arith.constant dense<0.000000e+00> : vector<8x128xf32>
    %84 = tpu.matmul %62, %6, %cst_22 {dimension_numbers = #tpu.dot_dimension_numbers<[1], [0], [0], [1], [0, 0, 1, 1], [], []>} : vector<8x32xf32>, vector<32x128xf32>, vector<8x128xf32> -> vector<8x128xf32>
    %85 = arith.addf %83, %84 : vector<8x128xf32>
    %86 = arith.negf %85 : vector<8x128xf32>
    %87 = math.exp %86 : vector<8x128xf32>
    %cst_23 = arith.constant 1.000000e+00 : f32
    %88 = vector.broadcast %cst_23 : f32 to vector<8x128xf32>
    %89 = arith.addf %88, %87 : vector<8x128xf32>
    %90 = arith.divf %88, %89 : vector<8x128xf32>
    %91 = math.tanh %85 : vector<8x128xf32>
    %92 = vector.extract_strided_slice %90 {offsets = [0, 0], sizes = [8, 32], strides = [1, 1]} : vector<8x128xf32> to vector<8x32xf32>
    %93 = vector.extract_strided_slice %90 {offsets = [0, 32], sizes = [8, 32], strides = [1, 1]} : vector<8x128xf32> to vector<8x32xf32>
    %94 = vector.extract_strided_slice %91 {offsets = [0, 64], sizes = [8, 32], strides = [1, 1]} : vector<8x128xf32> to vector<8x32xf32>
    %95 = vector.extract_strided_slice %90 {offsets = [0, 96], sizes = [8, 32], strides = [1, 1]} : vector<8x128xf32> to vector<8x32xf32>
    %96 = arith.mulf %93, %60 : vector<8x32xf32>
    %97 = arith.mulf %92, %94 : vector<8x32xf32>
    %98 = arith.addf %96, %97 : vector<8x32xf32>
    %99 = math.tanh %98 : vector<8x32xf32>
    %100 = arith.mulf %95, %99 : vector<8x32xf32>
    %cst_24 = arith.constant dense<0.000000e+00> : vector<8x128xf32>
    %101 = tpu.matmul %100, %7, %cst_24 {dimension_numbers = #tpu.dot_dimension_numbers<[1], [0], [0], [1], [0, 0, 1, 1], [], []>} : vector<8x32xf32>, vector<32x128xf32>, vector<8x128xf32> -> vector<8x128xf32>
    %102 = vector.broadcast %9 : vector<1x128xf32> to vector<8x128xf32>
    %103 = arith.addf %101, %102 : vector<8x128xf32>
    %cst_25 = arith.constant dense<0.000000e+00> : vector<8x128xf32>
    %104 = tpu.matmul %82, %8, %cst_25 {dimension_numbers = #tpu.dot_dimension_numbers<[1], [0], [0], [1], [0, 0, 1, 1], [], []>} : vector<8x32xf32>, vector<32x128xf32>, vector<8x128xf32> -> vector<8x128xf32>
    %105 = arith.addf %103, %104 : vector<8x128xf32>
    %106 = arith.negf %105 : vector<8x128xf32>
    %107 = math.exp %106 : vector<8x128xf32>
    %cst_26 = arith.constant 1.000000e+00 : f32
    %108 = vector.broadcast %cst_26 : f32 to vector<8x128xf32>
    %109 = arith.addf %108, %107 : vector<8x128xf32>
    %110 = arith.divf %108, %109 : vector<8x128xf32>
    %111 = math.tanh %105 : vector<8x128xf32>
    %112 = vector.extract_strided_slice %110 {offsets = [0, 0], sizes = [8, 32], strides = [1, 1]} : vector<8x128xf32> to vector<8x32xf32>
    %113 = vector.extract_strided_slice %110 {offsets = [0, 32], sizes = [8, 32], strides = [1, 1]} : vector<8x128xf32> to vector<8x32xf32>
    %114 = vector.extract_strided_slice %111 {offsets = [0, 64], sizes = [8, 32], strides = [1, 1]} : vector<8x128xf32> to vector<8x32xf32>
    %115 = vector.extract_strided_slice %110 {offsets = [0, 96], sizes = [8, 32], strides = [1, 1]} : vector<8x128xf32> to vector<8x32xf32>
    %116 = arith.mulf %113, %80 : vector<8x32xf32>
    %117 = arith.mulf %112, %114 : vector<8x32xf32>
    %118 = arith.addf %116, %117 : vector<8x32xf32>
    %119 = math.tanh %118 : vector<8x32xf32>
    %120 = arith.mulf %115, %119 : vector<8x32xf32>
    %121 = vector.extract_strided_slice %5 {offsets = [24, 0], sizes = [8, 128], strides = [1, 1]} : vector<64x128xf32> to vector<8x128xf32>
    %cst_27 = arith.constant dense<0.000000e+00> : vector<8x128xf32>
    %122 = tpu.matmul %100, %6, %cst_27 {dimension_numbers = #tpu.dot_dimension_numbers<[1], [0], [0], [1], [0, 0, 1, 1], [], []>} : vector<8x32xf32>, vector<32x128xf32>, vector<8x128xf32> -> vector<8x128xf32>
    %123 = arith.addf %121, %122 : vector<8x128xf32>
    %124 = arith.negf %123 : vector<8x128xf32>
    %125 = math.exp %124 : vector<8x128xf32>
    %cst_28 = arith.constant 1.000000e+00 : f32
    %126 = vector.broadcast %cst_28 : f32 to vector<8x128xf32>
    %127 = arith.addf %126, %125 : vector<8x128xf32>
    %128 = arith.divf %126, %127 : vector<8x128xf32>
    %129 = math.tanh %123 : vector<8x128xf32>
    %130 = vector.extract_strided_slice %128 {offsets = [0, 0], sizes = [8, 32], strides = [1, 1]} : vector<8x128xf32> to vector<8x32xf32>
    %131 = vector.extract_strided_slice %128 {offsets = [0, 32], sizes = [8, 32], strides = [1, 1]} : vector<8x128xf32> to vector<8x32xf32>
    %132 = vector.extract_strided_slice %129 {offsets = [0, 64], sizes = [8, 32], strides = [1, 1]} : vector<8x128xf32> to vector<8x32xf32>
    %133 = vector.extract_strided_slice %128 {offsets = [0, 96], sizes = [8, 32], strides = [1, 1]} : vector<8x128xf32> to vector<8x32xf32>
    %134 = arith.mulf %131, %98 : vector<8x32xf32>
    %135 = arith.mulf %130, %132 : vector<8x32xf32>
    %136 = arith.addf %134, %135 : vector<8x32xf32>
    %137 = math.tanh %136 : vector<8x32xf32>
    %138 = arith.mulf %133, %137 : vector<8x32xf32>
    %cst_29 = arith.constant dense<0.000000e+00> : vector<8x128xf32>
    %139 = tpu.matmul %138, %7, %cst_29 {dimension_numbers = #tpu.dot_dimension_numbers<[1], [0], [0], [1], [0, 0, 1, 1], [], []>} : vector<8x32xf32>, vector<32x128xf32>, vector<8x128xf32> -> vector<8x128xf32>
    %140 = vector.broadcast %9 : vector<1x128xf32> to vector<8x128xf32>
    %141 = arith.addf %139, %140 : vector<8x128xf32>
    %cst_30 = arith.constant dense<0.000000e+00> : vector<8x128xf32>
    %142 = tpu.matmul %120, %8, %cst_30 {dimension_numbers = #tpu.dot_dimension_numbers<[1], [0], [0], [1], [0, 0, 1, 1], [], []>} : vector<8x32xf32>, vector<32x128xf32>, vector<8x128xf32> -> vector<8x128xf32>
    %143 = arith.addf %141, %142 : vector<8x128xf32>
    %144 = arith.negf %143 : vector<8x128xf32>
    %145 = math.exp %144 : vector<8x128xf32>
    %cst_31 = arith.constant 1.000000e+00 : f32
    %146 = vector.broadcast %cst_31 : f32 to vector<8x128xf32>
    %147 = arith.addf %146, %145 : vector<8x128xf32>
    %148 = arith.divf %146, %147 : vector<8x128xf32>
    %149 = math.tanh %143 : vector<8x128xf32>
    %150 = vector.extract_strided_slice %148 {offsets = [0, 0], sizes = [8, 32], strides = [1, 1]} : vector<8x128xf32> to vector<8x32xf32>
    %151 = vector.extract_strided_slice %148 {offsets = [0, 32], sizes = [8, 32], strides = [1, 1]} : vector<8x128xf32> to vector<8x32xf32>
    %152 = vector.extract_strided_slice %149 {offsets = [0, 64], sizes = [8, 32], strides = [1, 1]} : vector<8x128xf32> to vector<8x32xf32>
    %153 = vector.extract_strided_slice %148 {offsets = [0, 96], sizes = [8, 32], strides = [1, 1]} : vector<8x128xf32> to vector<8x32xf32>
    %154 = arith.mulf %151, %118 : vector<8x32xf32>
    %155 = arith.mulf %150, %152 : vector<8x32xf32>
    %156 = arith.addf %154, %155 : vector<8x32xf32>
    %157 = math.tanh %156 : vector<8x32xf32>
    %158 = arith.mulf %153, %157 : vector<8x32xf32>
    %159 = vector.extract_strided_slice %5 {offsets = [32, 0], sizes = [8, 128], strides = [1, 1]} : vector<64x128xf32> to vector<8x128xf32>
    %cst_32 = arith.constant dense<0.000000e+00> : vector<8x128xf32>
    %160 = tpu.matmul %138, %6, %cst_32 {dimension_numbers = #tpu.dot_dimension_numbers<[1], [0], [0], [1], [0, 0, 1, 1], [], []>} : vector<8x32xf32>, vector<32x128xf32>, vector<8x128xf32> -> vector<8x128xf32>
    %161 = arith.addf %159, %160 : vector<8x128xf32>
    %162 = arith.negf %161 : vector<8x128xf32>
    %163 = math.exp %162 : vector<8x128xf32>
    %cst_33 = arith.constant 1.000000e+00 : f32
    %164 = vector.broadcast %cst_33 : f32 to vector<8x128xf32>
    %165 = arith.addf %164, %163 : vector<8x128xf32>
    %166 = arith.divf %164, %165 : vector<8x128xf32>
    %167 = math.tanh %161 : vector<8x128xf32>
    %168 = vector.extract_strided_slice %166 {offsets = [0, 0], sizes = [8, 32], strides = [1, 1]} : vector<8x128xf32> to vector<8x32xf32>
    %169 = vector.extract_strided_slice %166 {offsets = [0, 32], sizes = [8, 32], strides = [1, 1]} : vector<8x128xf32> to vector<8x32xf32>
    %170 = vector.extract_strided_slice %167 {offsets = [0, 64], sizes = [8, 32], strides = [1, 1]} : vector<8x128xf32> to vector<8x32xf32>
    %171 = vector.extract_strided_slice %166 {offsets = [0, 96], sizes = [8, 32], strides = [1, 1]} : vector<8x128xf32> to vector<8x32xf32>
    %172 = arith.mulf %169, %136 : vector<8x32xf32>
    %173 = arith.mulf %168, %170 : vector<8x32xf32>
    %174 = arith.addf %172, %173 : vector<8x32xf32>
    %175 = math.tanh %174 : vector<8x32xf32>
    %176 = arith.mulf %171, %175 : vector<8x32xf32>
    %cst_34 = arith.constant dense<0.000000e+00> : vector<8x128xf32>
    %177 = tpu.matmul %176, %7, %cst_34 {dimension_numbers = #tpu.dot_dimension_numbers<[1], [0], [0], [1], [0, 0, 1, 1], [], []>} : vector<8x32xf32>, vector<32x128xf32>, vector<8x128xf32> -> vector<8x128xf32>
    %178 = vector.broadcast %9 : vector<1x128xf32> to vector<8x128xf32>
    %179 = arith.addf %177, %178 : vector<8x128xf32>
    %cst_35 = arith.constant dense<0.000000e+00> : vector<8x128xf32>
    %180 = tpu.matmul %158, %8, %cst_35 {dimension_numbers = #tpu.dot_dimension_numbers<[1], [0], [0], [1], [0, 0, 1, 1], [], []>} : vector<8x32xf32>, vector<32x128xf32>, vector<8x128xf32> -> vector<8x128xf32>
    %181 = arith.addf %179, %180 : vector<8x128xf32>
    %182 = arith.negf %181 : vector<8x128xf32>
    %183 = math.exp %182 : vector<8x128xf32>
    %cst_36 = arith.constant 1.000000e+00 : f32
    %184 = vector.broadcast %cst_36 : f32 to vector<8x128xf32>
    %185 = arith.addf %184, %183 : vector<8x128xf32>
    %186 = arith.divf %184, %185 : vector<8x128xf32>
    %187 = math.tanh %181 : vector<8x128xf32>
    %188 = vector.extract_strided_slice %186 {offsets = [0, 0], sizes = [8, 32], strides = [1, 1]} : vector<8x128xf32> to vector<8x32xf32>
    %189 = vector.extract_strided_slice %186 {offsets = [0, 32], sizes = [8, 32], strides = [1, 1]} : vector<8x128xf32> to vector<8x32xf32>
    %190 = vector.extract_strided_slice %187 {offsets = [0, 64], sizes = [8, 32], strides = [1, 1]} : vector<8x128xf32> to vector<8x32xf32>
    %191 = vector.extract_strided_slice %186 {offsets = [0, 96], sizes = [8, 32], strides = [1, 1]} : vector<8x128xf32> to vector<8x32xf32>
    %192 = arith.mulf %189, %156 : vector<8x32xf32>
    %193 = arith.mulf %188, %190 : vector<8x32xf32>
    %194 = arith.addf %192, %193 : vector<8x32xf32>
    %195 = math.tanh %194 : vector<8x32xf32>
    %196 = arith.mulf %191, %195 : vector<8x32xf32>
    %197 = vector.extract_strided_slice %5 {offsets = [40, 0], sizes = [8, 128], strides = [1, 1]} : vector<64x128xf32> to vector<8x128xf32>
    %cst_37 = arith.constant dense<0.000000e+00> : vector<8x128xf32>
    %198 = tpu.matmul %176, %6, %cst_37 {dimension_numbers = #tpu.dot_dimension_numbers<[1], [0], [0], [1], [0, 0, 1, 1], [], []>} : vector<8x32xf32>, vector<32x128xf32>, vector<8x128xf32> -> vector<8x128xf32>
    %199 = arith.addf %197, %198 : vector<8x128xf32>
    %200 = arith.negf %199 : vector<8x128xf32>
    %201 = math.exp %200 : vector<8x128xf32>
    %cst_38 = arith.constant 1.000000e+00 : f32
    %202 = vector.broadcast %cst_38 : f32 to vector<8x128xf32>
    %203 = arith.addf %202, %201 : vector<8x128xf32>
    %204 = arith.divf %202, %203 : vector<8x128xf32>
    %205 = math.tanh %199 : vector<8x128xf32>
    %206 = vector.extract_strided_slice %204 {offsets = [0, 0], sizes = [8, 32], strides = [1, 1]} : vector<8x128xf32> to vector<8x32xf32>
    %207 = vector.extract_strided_slice %204 {offsets = [0, 32], sizes = [8, 32], strides = [1, 1]} : vector<8x128xf32> to vector<8x32xf32>
    %208 = vector.extract_strided_slice %205 {offsets = [0, 64], sizes = [8, 32], strides = [1, 1]} : vector<8x128xf32> to vector<8x32xf32>
    %209 = vector.extract_strided_slice %204 {offsets = [0, 96], sizes = [8, 32], strides = [1, 1]} : vector<8x128xf32> to vector<8x32xf32>
    %210 = arith.mulf %207, %174 : vector<8x32xf32>
    %211 = arith.mulf %206, %208 : vector<8x32xf32>
    %212 = arith.addf %210, %211 : vector<8x32xf32>
    %213 = math.tanh %212 : vector<8x32xf32>
    %214 = arith.mulf %209, %213 : vector<8x32xf32>
    %cst_39 = arith.constant dense<0.000000e+00> : vector<8x128xf32>
    %215 = tpu.matmul %214, %7, %cst_39 {dimension_numbers = #tpu.dot_dimension_numbers<[1], [0], [0], [1], [0, 0, 1, 1], [], []>} : vector<8x32xf32>, vector<32x128xf32>, vector<8x128xf32> -> vector<8x128xf32>
    %216 = vector.broadcast %9 : vector<1x128xf32> to vector<8x128xf32>
    %217 = arith.addf %215, %216 : vector<8x128xf32>
    %cst_40 = arith.constant dense<0.000000e+00> : vector<8x128xf32>
    %218 = tpu.matmul %196, %8, %cst_40 {dimension_numbers = #tpu.dot_dimension_numbers<[1], [0], [0], [1], [0, 0, 1, 1], [], []>} : vector<8x32xf32>, vector<32x128xf32>, vector<8x128xf32> -> vector<8x128xf32>
    %219 = arith.addf %217, %218 : vector<8x128xf32>
    %220 = arith.negf %219 : vector<8x128xf32>
    %221 = math.exp %220 : vector<8x128xf32>
    %cst_41 = arith.constant 1.000000e+00 : f32
    %222 = vector.broadcast %cst_41 : f32 to vector<8x128xf32>
    %223 = arith.addf %222, %221 : vector<8x128xf32>
    %224 = arith.divf %222, %223 : vector<8x128xf32>
    %225 = math.tanh %219 : vector<8x128xf32>
    %226 = vector.extract_strided_slice %224 {offsets = [0, 0], sizes = [8, 32], strides = [1, 1]} : vector<8x128xf32> to vector<8x32xf32>
    %227 = vector.extract_strided_slice %224 {offsets = [0, 32], sizes = [8, 32], strides = [1, 1]} : vector<8x128xf32> to vector<8x32xf32>
    %228 = vector.extract_strided_slice %225 {offsets = [0, 64], sizes = [8, 32], strides = [1, 1]} : vector<8x128xf32> to vector<8x32xf32>
    %229 = vector.extract_strided_slice %224 {offsets = [0, 96], sizes = [8, 32], strides = [1, 1]} : vector<8x128xf32> to vector<8x32xf32>
    %230 = arith.mulf %227, %194 : vector<8x32xf32>
    %231 = arith.mulf %226, %228 : vector<8x32xf32>
    %232 = arith.addf %230, %231 : vector<8x32xf32>
    %233 = math.tanh %232 : vector<8x32xf32>
    %234 = arith.mulf %229, %233 : vector<8x32xf32>
    %235 = vector.extract_strided_slice %5 {offsets = [48, 0], sizes = [8, 128], strides = [1, 1]} : vector<64x128xf32> to vector<8x128xf32>
    %cst_42 = arith.constant dense<0.000000e+00> : vector<8x128xf32>
    %236 = tpu.matmul %214, %6, %cst_42 {dimension_numbers = #tpu.dot_dimension_numbers<[1], [0], [0], [1], [0, 0, 1, 1], [], []>} : vector<8x32xf32>, vector<32x128xf32>, vector<8x128xf32> -> vector<8x128xf32>
    %237 = arith.addf %235, %236 : vector<8x128xf32>
    %238 = arith.negf %237 : vector<8x128xf32>
    %239 = math.exp %238 : vector<8x128xf32>
    %cst_43 = arith.constant 1.000000e+00 : f32
    %240 = vector.broadcast %cst_43 : f32 to vector<8x128xf32>
    %241 = arith.addf %240, %239 : vector<8x128xf32>
    %242 = arith.divf %240, %241 : vector<8x128xf32>
    %243 = math.tanh %237 : vector<8x128xf32>
    %244 = vector.extract_strided_slice %242 {offsets = [0, 0], sizes = [8, 32], strides = [1, 1]} : vector<8x128xf32> to vector<8x32xf32>
    %245 = vector.extract_strided_slice %242 {offsets = [0, 32], sizes = [8, 32], strides = [1, 1]} : vector<8x128xf32> to vector<8x32xf32>
    %246 = vector.extract_strided_slice %243 {offsets = [0, 64], sizes = [8, 32], strides = [1, 1]} : vector<8x128xf32> to vector<8x32xf32>
    %247 = vector.extract_strided_slice %242 {offsets = [0, 96], sizes = [8, 32], strides = [1, 1]} : vector<8x128xf32> to vector<8x32xf32>
    %248 = arith.mulf %245, %212 : vector<8x32xf32>
    %249 = arith.mulf %244, %246 : vector<8x32xf32>
    %250 = arith.addf %248, %249 : vector<8x32xf32>
    %251 = math.tanh %250 : vector<8x32xf32>
    %252 = arith.mulf %247, %251 : vector<8x32xf32>
    %cst_44 = arith.constant dense<0.000000e+00> : vector<8x128xf32>
    %253 = tpu.matmul %252, %7, %cst_44 {dimension_numbers = #tpu.dot_dimension_numbers<[1], [0], [0], [1], [0, 0, 1, 1], [], []>} : vector<8x32xf32>, vector<32x128xf32>, vector<8x128xf32> -> vector<8x128xf32>
    %254 = vector.broadcast %9 : vector<1x128xf32> to vector<8x128xf32>
    %255 = arith.addf %253, %254 : vector<8x128xf32>
    %cst_45 = arith.constant dense<0.000000e+00> : vector<8x128xf32>
    %256 = tpu.matmul %234, %8, %cst_45 {dimension_numbers = #tpu.dot_dimension_numbers<[1], [0], [0], [1], [0, 0, 1, 1], [], []>} : vector<8x32xf32>, vector<32x128xf32>, vector<8x128xf32> -> vector<8x128xf32>
    %257 = arith.addf %255, %256 : vector<8x128xf32>
    %258 = arith.negf %257 : vector<8x128xf32>
    %259 = math.exp %258 : vector<8x128xf32>
    %cst_46 = arith.constant 1.000000e+00 : f32
    %260 = vector.broadcast %cst_46 : f32 to vector<8x128xf32>
    %261 = arith.addf %260, %259 : vector<8x128xf32>
    %262 = arith.divf %260, %261 : vector<8x128xf32>
    %263 = math.tanh %257 : vector<8x128xf32>
    %264 = vector.extract_strided_slice %262 {offsets = [0, 0], sizes = [8, 32], strides = [1, 1]} : vector<8x128xf32> to vector<8x32xf32>
    %265 = vector.extract_strided_slice %262 {offsets = [0, 32], sizes = [8, 32], strides = [1, 1]} : vector<8x128xf32> to vector<8x32xf32>
    %266 = vector.extract_strided_slice %263 {offsets = [0, 64], sizes = [8, 32], strides = [1, 1]} : vector<8x128xf32> to vector<8x32xf32>
    %267 = vector.extract_strided_slice %262 {offsets = [0, 96], sizes = [8, 32], strides = [1, 1]} : vector<8x128xf32> to vector<8x32xf32>
    %268 = arith.mulf %265, %232 : vector<8x32xf32>
    %269 = arith.mulf %264, %266 : vector<8x32xf32>
    %270 = arith.addf %268, %269 : vector<8x32xf32>
    %271 = math.tanh %270 : vector<8x32xf32>
    %272 = arith.mulf %267, %271 : vector<8x32xf32>
    %273 = vector.extract_strided_slice %5 {offsets = [56, 0], sizes = [8, 128], strides = [1, 1]} : vector<64x128xf32> to vector<8x128xf32>
    %cst_47 = arith.constant dense<0.000000e+00> : vector<8x128xf32>
    %274 = tpu.matmul %252, %6, %cst_47 {dimension_numbers = #tpu.dot_dimension_numbers<[1], [0], [0], [1], [0, 0, 1, 1], [], []>} : vector<8x32xf32>, vector<32x128xf32>, vector<8x128xf32> -> vector<8x128xf32>
    %275 = arith.addf %273, %274 : vector<8x128xf32>
    %276 = arith.negf %275 : vector<8x128xf32>
    %277 = math.exp %276 : vector<8x128xf32>
    %cst_48 = arith.constant 1.000000e+00 : f32
    %278 = vector.broadcast %cst_48 : f32 to vector<8x128xf32>
    %279 = arith.addf %278, %277 : vector<8x128xf32>
    %280 = arith.divf %278, %279 : vector<8x128xf32>
    %281 = math.tanh %275 : vector<8x128xf32>
    %282 = vector.extract_strided_slice %280 {offsets = [0, 0], sizes = [8, 32], strides = [1, 1]} : vector<8x128xf32> to vector<8x32xf32>
    %283 = vector.extract_strided_slice %280 {offsets = [0, 32], sizes = [8, 32], strides = [1, 1]} : vector<8x128xf32> to vector<8x32xf32>
    %284 = vector.extract_strided_slice %281 {offsets = [0, 64], sizes = [8, 32], strides = [1, 1]} : vector<8x128xf32> to vector<8x32xf32>
    %285 = vector.extract_strided_slice %280 {offsets = [0, 96], sizes = [8, 32], strides = [1, 1]} : vector<8x128xf32> to vector<8x32xf32>
    %286 = arith.mulf %283, %250 : vector<8x32xf32>
    %287 = arith.mulf %282, %284 : vector<8x32xf32>
    %288 = arith.addf %286, %287 : vector<8x32xf32>
    %289 = math.tanh %288 : vector<8x32xf32>
    %290 = arith.mulf %285, %289 : vector<8x32xf32>
    %cst_49 = arith.constant dense<0.000000e+00> : vector<8x128xf32>
    %291 = tpu.matmul %290, %7, %cst_49 {dimension_numbers = #tpu.dot_dimension_numbers<[1], [0], [0], [1], [0, 0, 1, 1], [], []>} : vector<8x32xf32>, vector<32x128xf32>, vector<8x128xf32> -> vector<8x128xf32>
    %292 = vector.broadcast %9 : vector<1x128xf32> to vector<8x128xf32>
    %293 = arith.addf %291, %292 : vector<8x128xf32>
    %cst_50 = arith.constant dense<0.000000e+00> : vector<8x128xf32>
    %294 = tpu.matmul %272, %8, %cst_50 {dimension_numbers = #tpu.dot_dimension_numbers<[1], [0], [0], [1], [0, 0, 1, 1], [], []>} : vector<8x32xf32>, vector<32x128xf32>, vector<8x128xf32> -> vector<8x128xf32>
    %295 = arith.addf %293, %294 : vector<8x128xf32>
    %296 = arith.negf %295 : vector<8x128xf32>
    %297 = math.exp %296 : vector<8x128xf32>
    %cst_51 = arith.constant 1.000000e+00 : f32
    %298 = vector.broadcast %cst_51 : f32 to vector<8x128xf32>
    %299 = arith.addf %298, %297 : vector<8x128xf32>
    %300 = arith.divf %298, %299 : vector<8x128xf32>
    %301 = math.tanh %295 : vector<8x128xf32>
    %302 = vector.extract_strided_slice %300 {offsets = [0, 0], sizes = [8, 32], strides = [1, 1]} : vector<8x128xf32> to vector<8x32xf32>
    %303 = vector.extract_strided_slice %300 {offsets = [0, 32], sizes = [8, 32], strides = [1, 1]} : vector<8x128xf32> to vector<8x32xf32>
    %304 = vector.extract_strided_slice %301 {offsets = [0, 64], sizes = [8, 32], strides = [1, 1]} : vector<8x128xf32> to vector<8x32xf32>
    %305 = vector.extract_strided_slice %300 {offsets = [0, 96], sizes = [8, 32], strides = [1, 1]} : vector<8x128xf32> to vector<8x32xf32>
    %306 = arith.mulf %303, %270 : vector<8x32xf32>
    %307 = arith.mulf %302, %304 : vector<8x32xf32>
    %308 = arith.addf %306, %307 : vector<8x32xf32>
    %309 = math.tanh %308 : vector<8x32xf32>
    %310 = arith.mulf %305, %309 : vector<8x32xf32>
    %c0_52 = arith.constant 0 : index
    %c0_53 = arith.constant 0 : index
    %311 = vector.load %arg7[%c0_52, %c0_53] : memref<1x32xf32, #tpu.memory_space<vmem>>, vector<1x32xf32>
    %312 = vector.broadcast %311 : vector<1x32xf32> to vector<8x32xf32>
    %313 = arith.mulf %310, %312 : vector<8x32xf32>
    %cst_54 = arith.constant dense<0.000000e+00> : vector<8xf32>
    %314 = vector.multi_reduction <add>, %313, %cst_54 [1] : vector<8x32xf32> to vector<8xf32>
    %315 = vector.shape_cast %314 : vector<8xf32> to vector<8x1xf32>
    %c0_55 = arith.constant 0 : index
    %c0_56 = arith.constant 0 : index
    %316 = vector.load %arg8[%c0_55, %c0_56] : memref<1x1xf32, #tpu.memory_space<vmem>>, vector<1x1xf32>
    %317 = vector.broadcast %316 : vector<1x1xf32> to vector<8x1xf32>
    %318 = arith.addf %315, %317 : vector<8x1xf32>
    %c0_57 = arith.constant 0 : index
    %c0_58 = arith.constant 0 : index
    %319 = vector.load %arg9[%c0_57, %c0_58] : memref<8x1xf32, #tpu.memory_space<vmem>>, vector<8x1xf32>
    tpu.vector_store %arg9[%c0_57, %c0_58], %318 {strides = array<i32>} : memref<8x1xf32, #tpu.memory_space<vmem>>, vector<8x1xf32>,
    return
  }
}

</mosaic_0001>

<llo_original>
// kernel: predict_cases_forward.1
$region0: #{predict_cases_forward.1}
  #allocation0 [shape = 'u32[]', space=smem, size = 0x4, offset = 0x4, fixed_abs, tag = 'smem constant byte address 0x4 - core index']
  #allocation1 [shape = 'u32[144,128]{1,0:T(1,128)}', space=vmem, size = 0x12000, scoped, tag = 'internal scratch']
  #allocation2 [shape = 'f32[1,1]{1,0:T(1,128)S(1)}', space=vmem, size = 0x200, scoped, tag = 'scoped memory for predict_cases_forward.1']
  %s0 = inlined_call_operand.vmem [shape: f32[64,4], index: 0, kind: input, shape index: {}]
  %s1 = inlined_call_operand.vmem [shape: f32[4,128], index: 1, kind: input, shape index: {}]
  %s2 = inlined_call_operand.vmem [shape: f32[1,128], index: 2, kind: input, shape index: {}]
  %s3 = inlined_call_operand.vmem [shape: f32[32,128], index: 3, kind: input, shape index: {}]
  %s4 = inlined_call_operand.vmem [shape: f32[32,128], index: 4, kind: input, shape index: {}]
  %s5 = inlined_call_operand.vmem [shape: f32[32,128], index: 5, kind: input, shape index: {}]
  %s6 = inlined_call_operand.vmem [shape: f32[1,128], index: 6, kind: input, shape index: {}]
  %s7 = inlined_call_operand.vmem [shape: f32[1,32], index: 7, kind: input, shape index: {}]
  %s8 = inlined_call_operand.<no memory space> [shape: f32[1,1], index: 8, kind: input, shape index: {}]
  %s9 = inlined_call_operand.vmem [shape: f32[8,1], index: 9, kind: output, shape index: {}]
  %s10 = sld [smem:[#allocation0]]
  $region46: #{predict_cases_forward.1} parent=0
    _
  %s12 = ssub.s32 1, %s10
  %s13 = scalar_select 0, %s12, %s10
  %v14 = vstv %s8
  %15 = vst [vmem:[#allocation2] sm:$0x1] %v14
  // Predicated region
  $region2: #{predict_cases_forward.1} parent=0 // pred_check
    _
  $region3: #{predict_cases_forward.1} parent=0 // pred_check_branch
    %17 = sbr.rel (0) target = $region5
  $region4: #{predict_cases_forward.1} parent=0 // pred_region
    _
  $region5: #{predict_cases_forward.1} parent=0 // pred_fallthru
    _
  // Predicated region
  $region6: #{predict_cases_forward.1} parent=0 // pred_check
    _
  $region7: #{predict_cases_forward.1} parent=0 // pred_check_branch
    %19 = sbr.rel (0) target = $region9
  $region8: #{predict_cases_forward.1} parent=0 // pred_region
    _
  $region9: #{predict_cases_forward.1} parent=0 // pred_fallthru
    _
  // Predicated region
  $region10: #{predict_cases_forward.1} parent=0 // pred_check
    _
  $region11: #{predict_cases_forward.1} parent=0 // pred_check_branch
    %21 = sbr.rel (0) target = $region13
  $region12: #{predict_cases_forward.1} parent=0 // pred_region
    _
  $region13: #{predict_cases_forward.1} parent=0 // pred_fallthru
    _
  // Predicated region
  $region14: #{predict_cases_forward.1} parent=0 // pred_check
    _
  $region15: #{predict_cases_forward.1} parent=0 // pred_check_branch
    %23 = sbr.rel (0) target = $region17
  $region16: #{predict_cases_forward.1} parent=0 // pred_region
    _
  $region17: #{predict_cases_forward.1} parent=0 // pred_fallthru
    _
  // Predicated region
  $region18: #{predict_cases_forward.1} parent=0 // pred_check
    _
  $region19: #{predict_cases_forward.1} parent=0 // pred_check_branch
    %25 = sbr.rel (0) target = $region21
  $region20: #{predict_cases_forward.1} parent=0 // pred_region
    _
  $region21: #{predict_cases_forward.1} parent=0 // pred_fallthru
    _
  // Predicated region
  $region22: #{predict_cases_forward.1} parent=0 // pred_check
    _
  $region23: #{predict_cases_forward.1} parent=0 // pred_check_branch
    %27 = sbr.rel (0) target = $region25
  $region24: #{predict_cases_forward.1} parent=0 // pred_region
    _
  $region25: #{predict_cases_forward.1} parent=0 // pred_fallthru
    _
  // Predicated region
  $region26: #{predict_cases_forward.1} parent=0 // pred_check
    _
  $region27: #{predict_cases_forward.1} parent=0 // pred_check_branch
    %29 = sbr.rel (0) target = $region29
  $region28: #{predict_cases_forward.1} parent=0 // pred_region
    _
  $region29: #{predict_cases_forward.1} parent=0 // pred_fallthru
    _
  // Predicated region
  $region30: #{predict_cases_forward.1} parent=0 // pred_check
    _
  $region31: #{predict_cases_forward.1} parent=0 // pred_check_branch
    %31 = sbr.rel (0) target = $region33
  $region32: #{predict_cases_forward.1} parent=0 // pred_region
    _
  $region33: #{predict_cases_forward.1} parent=0 // pred_fallthru
    _
  // Predicated region
  $region34: #{predict_cases_forward.1} parent=0 // pred_check
    _
  $region35: #{predict_cases_forward.1} parent=0 // pred_check_branch
    %33 = sbr.rel (0) target = $region37
  $region36: #{predict_cases_forward.1} parent=0 // pred_region
    _
  $region37: #{predict_cases_forward.1} parent=0 // pred_fallthru
    _
  %v34 = vld [vmem:[%s0] sm:$0xff]
  %v35 = vld [vmem:[%s0 + $0x8] sm:$0xff]
  %v36 = vld [vmem:[%s0 + $0x10] sm:$0xff]
  %v37 = vld [vmem:[%s0 + $0x18] sm:$0xff]
  %v38 = vld [vmem:[%s0 + $0x20] sm:$0xff]
  %v39 = vld [vmem:[%s0 + $0x28] sm:$0xff]
  %v40 = vld [vmem:[%s0 + $0x30] sm:$0xff]
  %v41 = vld [vmem:[%s0 + $0x38] sm:$0xff]
  %v42 = vld [vmem:[%s1] sm:$0xf]
  %v43 = vld [vmem:[%s2] sm:$0x1]
  %v45 = vlaneseq
  %v46 = vshrl.u32 %v45, 7
  %v47 = vsub.s32 0, %v46
  %v48 = vrot.slane %v43, %v47
  %vm50 = vcmask 31744
  %v52 = vsel %vm50, %v34, 0
  %v55 = vsel %vm50, %v35, 0
  %v58 = vsel %vm50, %v36, 0
  %v61 = vsel %vm50, %v37, 0
  %v64 = vsel %vm50, %v38, 0
  %v67 = vsel %vm50, %v39, 0
  %v70 = vsel %vm50, %v40, 0
  %v73 = vsel %vm50, %v41, 0
  %vm75 = vcmask 1043456
  %v77 = vsel %vm75, %v42, 0
  %79 = vmatprep.subr.mxu0 0.0
  %80 = vmatpush1.msra.mxu0 0.0
  %81 = vmatprep.subr.mxu0 0.0
  %82 = vmatpush1.msra.mxu0 0.0
  %83 = vmatprep.subr.mxu0 0.0
  %84 = vmatpush1.msra.mxu0 0.0
  %85 = vmatprep.subr.mxu0 0.0
  %86 = vmatpush1.msra.mxu0 0.0
  %87 = vmatprep.subr.mxu0 0.0
  %88 = vmatpush1.msra.mxu0 0.0
  %89 = vmatprep.subr.mxu0 0.0
  %90 = vmatpush1.msra.mxu0 0.0
  %91 = vmatprep.subr.mxu0 0.0
  %92 = vmatpush1.msra.mxu0 0.0
  %93 = vmatprep.subr.mxu0 0.0
  %94 = vmatpush1.msra.mxu0 0.0
  %95 = vmatprep.subr.mxu0 0.0
  %96 = vmatpush1.msra.mxu0 0.0
  %97 = vmatprep.subr.mxu0 0.0
  %98 = vmatpush1.msra.mxu0 0.0
  %99 = vmatprep.subr.mxu0 0.0
  %100 = vmatpush1.msra.mxu0 0.0
  %101 = vmatprep.subr.mxu0 0.0
  %102 = vmatpush1.msra.mxu0 0.0
  %103 = vmatprep.subr.mxu0 0.0
  %104 = vmatpush1.msra.mxu0 0.0
  %105 = vmatprep.subr.mxu0 0.0
  %106 = vmatpush1.msra.mxu0 0.0
  %107 = vmatprep.subr.mxu0 0.0
  %108 = vmatpush1.msra.mxu0 0.0
  %109 = vmatprep.subr.mxu0 0.0
  %110 = vmatpush1.msra.mxu0 %v77
  %111 = vmatprep.subr.mxu0 0.0
  %112 = vmatpush2.msra.mxu0 0.0
  %113 = vmatprep.subr.mxu0 0.0
  %114 = vmatpush2.msra.mxu0 0.0
  %115 = vmatprep.subr.mxu0 0.0
  %116 = vmatpush2.msra.mxu0 0.0
  %117 = vmatprep.subr.mxu0 0.0
  %118 = vmatpush2.msra.mxu0 0.0
  %119 = vmatprep.subr.mxu0 0.0
  %120 = vmatpush2.msra.mxu0 0.0
  %121 = vmatprep.subr.mxu0 0.0
  %122 = vmatpush2.msra.mxu0 0.0
  %123 = vmatprep.subr.mxu0 0.0
  %124 = vmatpush2.msra.mxu0 0.0
  %125 = vmatprep.subr.mxu0 0.0
  %126 = vmatpush2.msra.mxu0 0.0
  %127 = vmatprep.subr.mxu0 0.0
  %128 = vmatpush2.msra.mxu0 0.0
  %129 = vmatprep.subr.mxu0 0.0
  %130 = vmatpush2.msra.mxu0 0.0
  %131 = vmatprep.subr.mxu0 0.0
  %132 = vmatpush2.msra.mxu0 0.0
  %133 = vmatprep.subr.mxu0 0.0
  %134 = vmatpush2.msra.mxu0 0.0
  %135 = vmatprep.subr.mxu0 0.0
  %136 = vmatpush2.msra.mxu0 0.0
  %137 = vmatprep.subr.mxu0 0.0
  %138 = vmatpush2.msra.mxu0 0.0
  %139 = vmatprep.subr.mxu0 0.0
  %140 = vmatpush2.msra.mxu0 0.0
  %141 = vmatprep.subr.mxu0 0.0
  %142 = vmatpush2.msra.mxu0 0.0
  %143 = vmatprep.mubr.f32.mxu0 0.0
  %144 = vmatmul.mubr.f32.gmra.mxu0 %v52
  %v145 = vpop.f32.mrf.mxu0
  %v146 = vadd.f32 %v48, %v145
  %v147 = vpop.f32.mrf.mxu0
  %148 = vmatprep.mubr.f32.mxu0 0.0
  %149 = vmatmul.mubr.f32.gmra.mxu0 %v55
  %v150 = vpop.f32.mrf.mxu0
  %v151 = vadd.f32 %v48, %v150
  %v152 = vpop.f32.mrf.mxu0
  %153 = vmatprep.mubr.f32.mxu0 0.0
  %154 = vmatmul.mubr.f32.gmra.mxu0 %v58
  %v155 = vpop.f32.mrf.mxu0
  %v156 = vadd.f32 %v48, %v155
  %v157 = vpop.f32.mrf.mxu0
  %158 = vmatprep.mubr.f32.mxu0 0.0
  %159 = vmatmul.mubr.f32.gmra.mxu0 %v61
  %v160 = vpop.f32.mrf.mxu0
  %v161 = vadd.f32 %v48, %v160
  %v162 = vpop.f32.mrf.mxu0
  %163 = vmatprep.mubr.f32.mxu0 0.0
  %164 = vmatmul.mubr.f32.gmra.mxu0 %v64
  %v165 = vpop.f32.mrf.mxu0
  %v166 = vadd.f32 %v48, %v165
  %v167 = vpop.f32.mrf.mxu0
  %168 = vmatprep.mubr.f32.mxu0 0.0
  %169 = vmatmul.mubr.f32.gmra.mxu0 %v67
  %v170 = vpop.f32.mrf.mxu0
  %v171 = vadd.f32 %v48, %v170
  %v172 = vpop.f32.mrf.mxu0
  %173 = vmatprep.mubr.f32.mxu0 0.0
  %174 = vmatmul.mubr.f32.gmra.mxu0 %v70
  %v175 = vpop.f32.mrf.mxu0
  %v176 = vadd.f32 %v48, %v175
  %v177 = vpop.f32.mrf.mxu0
  %178 = vmatprep.mubr.f32.mxu0 0.0
  %179 = vmatmul.mubr.f32.gmra.mxu0 %v73
  %v180 = vpop.f32.mrf.mxu0
  %v181 = vadd.f32 %v48, %v180
  %v182 = vpop.f32.mrf.mxu0
  %183 = vdwg.mxu0
  %v184 = vld [vmem:[%s3] sm:$0xff]
  %v185 = vld [vmem:[%s3 + $0x8] sm:$0xff]
  %v186 = vld [vmem:[%s3 + $0x10] sm:$0xff]
  %v187 = vld [vmem:[%s3 + $0x18] sm:$0xff]
  %v188 = vld [vmem:[%s4] sm:$0xff]
  %v189 = vld [vmem:[%s4 + $0x8] sm:$0xff]
  %v190 = vld [vmem:[%s4 + $0x10] sm:$0xff]
  %v191 = vld [vmem:[%s4 + $0x18] sm:$0xff]
  %v192 = vld [vmem:[%s5] sm:$0xff]
  %v193 = vld [vmem:[%s5 + $0x8] sm:$0xff]
  %v194 = vld [vmem:[%s5 + $0x10] sm:$0xff]
  %v195 = vld [vmem:[%s5 + $0x18] sm:$0xff]
  %v196 = vld [vmem:[%s6] sm:$0x1]
  %v197 = vxor.u32 %v146, 2147483648
  %v198 = vmul.f32 %v197, 1.442695
  %v199 = vpow.pop %v198
  %v200 = vadd.f32 %v199, 1.0
  %v201 = vrcp.pop %v200
  %v202 = vmul.f32 1.0, %v201
  %v203 = vtanh.pop %v146
  %v204 = vmul.f32 %v202, 0.0
  %206 = vrot.lane.b32.xlu0 %v203, 64
  %v207 = vpop.permute.xlu0 %206
  %v209 = vmul.f32 %v202, %v207
  %211 = vrot.lane.b32.xlu0 %v209, 32
  %v212 = vpop.permute.xlu0 %211
  %v214 = vadd.f32 %v204, %v212
  %v215 = vtanh.pop %v214
  %217 = vrot.lane.b32.xlu0 %v215, 64
  %v218 = vpop.permute.xlu0 %217
  %v220 = vmul.f32 %v202, %v218
  %v222 = vlaneseq
  %v223 = vshrl.u32 %v222, 7
  %v224 = vsub.s32 0, %v223
  %v225 = vrot.slane %v196, %v224
  %228 = vrot.lane.b32.xlu0 %v220, 32
  %v229 = vpop.permute.xlu0 %228
  %vm230 = vcmask 261120
  %v231 = vsel %vm230, %v229, 0
  %233 = vmatprep.subr.mxu0 0.0
  %234 = vmatpush1.msra.mxu0 0.0
  %235 = vmatprep.subr.mxu0 0.0
  %236 = vmatpush1.msra.mxu0 0.0
  %237 = vmatprep.subr.mxu0 0.0
  %238 = vmatpush1.msra.mxu0 0.0
  %239 = vmatprep.subr.mxu0 0.0
  %240 = vmatpush1.msra.mxu0 0.0
  %241 = vmatprep.subr.mxu0 0.0
  %242 = vmatpush1.msra.mxu0 0.0
  %243 = vmatprep.subr.mxu0 0.0
  %244 = vmatpush1.msra.mxu0 0.0
  %245 = vmatprep.subr.mxu0 0.0
  %246 = vmatpush1.msra.mxu0 0.0
  %247 = vmatprep.subr.mxu0 0.0
  %248 = vmatpush1.msra.mxu0 0.0
  %249 = vmatprep.subr.mxu0 0.0
  %250 = vmatpush1.msra.mxu0 0.0
  %251 = vmatprep.subr.mxu0 0.0
  %252 = vmatpush1.msra.mxu0 0.0
  %253 = vmatprep.subr.mxu0 0.0
  %254 = vmatpush1.msra.mxu0 0.0
  %255 = vmatprep.subr.mxu0 0.0
  %256 = vmatpush1.msra.mxu0 0.0
  %257 = vmatprep.subr.mxu0 0.0
  %258 = vmatpush1.msra.mxu0 %v191
  %259 = vmatprep.subr.mxu0 0.0
  %260 = vmatpush1.msra.mxu0 %v190
  %261 = vmatprep.subr.mxu0 0.0
  %262 = vmatpush1.msra.mxu0 %v189
  %263 = vmatprep.subr.mxu0 0.0
  %264 = vmatpush1.msra.mxu0 %v188
  %265 = vmatprep.subr.mxu0 0.0
  %266 = vmatpush2.msra.mxu0 0.0
  %267 = vmatprep.subr.mxu0 0.0
  %268 = vmatpush2.msra.mxu0 0.0
  %269 = vmatprep.subr.mxu0 0.0
  %270 = vmatpush2.msra.mxu0 0.0
  %271 = vmatprep.subr.mxu0 0.0
  %272 = vmatpush2.msra.mxu0 0.0
  %273 = vmatprep.subr.mxu0 0.0
  %274 = vmatpush2.msra.mxu0 0.0
  %275 = vmatprep.subr.mxu0 0.0
  %276 = vmatpush2.msra.mxu0 0.0
  %277 = vmatprep.subr.mxu0 0.0
  %278 = vmatpush2.msra.mxu0 0.0
  %279 = vmatprep.subr.mxu0 0.0
  %280 = vmatpush2.msra.mxu0 0.0
  %281 = vmatprep.subr.mxu0 0.0
  %282 = vmatpush2.msra.mxu0 0.0
  %283 = vmatprep.subr.mxu0 0.0
  %284 = vmatpush2.msra.mxu0 0.0
  %285 = vmatprep.subr.mxu0 0.0
  %286 = vmatpush2.msra.mxu0 0.0
  %287 = vmatprep.subr.mxu0 0.0
  %288 = vmatpush2.msra.mxu0 0.0
  %289 = vmatprep.subr.mxu0 0.0
  %290 = vmatpush2.msra.mxu0 0.0
  %291 = vmatprep.subr.mxu0 0.0
  %292 = vmatpush2.msra.mxu0 0.0
  %293 = vmatprep.subr.mxu0 0.0
  %294 = vmatpush2.msra.mxu0 0.0
  %295 = vmatprep.subr.mxu0 0.0
  %296 = vmatpush2.msra.mxu0 0.0
  %297 = vmatprep.mubr.f32.mxu0 0.0
  %298 = vmatmul.mubr.f32.gmra.mxu0 %v231
  %v299 = vpop.f32.mrf.mxu0
  %v300 = vadd.f32 %v225, %v299
  %v301 = vpop.f32.mrf.mxu0
  %302 = vdwg.mxu0
  %v303 = vxor.u32 %v300, 2147483648
  %v304 = vmul.f32 %v303, 1.442695
  %v305 = vpow.pop %v304
  %v306 = vadd.f32 %v305, 1.0
  %v307 = vrcp.pop %v306
  %v308 = vmul.f32 1.0, %v307
  %v309 = vtanh.pop %v300
  %v310 = vmul.f32 %v308, 0.0
  %312 = vrot.lane.b32.xlu0 %v309, 64
  %v313 = vpop.permute.xlu0 %312
  %v315 = vmul.f32 %v308, %v313
  %317 = vrot.lane.b32.xlu0 %v315, 32
  %v318 = vpop.permute.xlu0 %317
  %v320 = vadd.f32 %v310, %v318
  %v321 = vtanh.pop %v320
  %323 = vrot.lane.b32.xlu0 %v321, 64
  %v324 = vpop.permute.xlu0 %323
  %v326 = vmul.f32 %v308, %v324
  %327 = vmatprep.subr.mxu0 0.0
  %328 = vmatpush1.msra.mxu0 0.0
  %329 = vmatprep.subr.mxu0 0.0
  %330 = vmatpush1.msra.mxu0 0.0
  %331 = vmatprep.subr.mxu0 0.0
  %332 = vmatpush1.msra.mxu0 0.0
  %333 = vmatprep.subr.mxu0 0.0
  %334 = vmatpush1.msra.mxu0 0.0
  %335 = vmatprep.subr.mxu0 0.0
  %336 = vmatpush1.msra.mxu0 0.0
  %337 = vmatprep.subr.mxu0 0.0
  %338 = vmatpush1.msra.mxu0 0.0
  %339 = vmatprep.subr.mxu0 0.0
  %340 = vmatpush1.msra.mxu0 0.0
  %341 = vmatprep.subr.mxu0 0.0
  %342 = vmatpush1.msra.mxu0 0.0
  %343 = vmatprep.subr.mxu0 0.0
  %344 = vmatpush1.msra.mxu0 0.0
  %345 = vmatprep.subr.mxu0 0.0
  %346 = vmatpush1.msra.mxu0 0.0
  %347 = vmatprep.subr.mxu0 0.0
  %348 = vmatpush1.msra.mxu0 0.0
  %349 = vmatprep.subr.mxu0 0.0
  %350 = vmatpush1.msra.mxu0 0.0
  %351 = vmatprep.subr.mxu0 0.0
  %352 = vmatpush1.msra.mxu0 %v187
  %353 = vmatprep.subr.mxu0 0.0
  %354 = vmatpush1.msra.mxu0 %v186
  %355 = vmatprep.subr.mxu0 0.0
  %356 = vmatpush1.msra.mxu0 %v185
  %357 = vmatprep.subr.mxu0 0.0
  %358 = vmatpush1.msra.mxu0 %v184
  %359 = vmatprep.subr.mxu0 0.0
  %360 = vmatpush2.msra.mxu0 0.0
  %361 = vmatprep.subr.mxu0 0.0
  %362 = vmatpush2.msra.mxu0 0.0
  %363 = vmatprep.subr.mxu0 0.0
  %364 = vmatpush2.msra.mxu0 0.0
  %365 = vmatprep.subr.mxu0 0.0
  %366 = vmatpush2.msra.mxu0 0.0
  %367 = vmatprep.subr.mxu0 0.0
  %368 = vmatpush2.msra.mxu0 0.0
  %369 = vmatprep.subr.mxu0 0.0
  %370 = vmatpush2.msra.mxu0 0.0
  %371 = vmatprep.subr.mxu0 0.0
  %372 = vmatpush2.msra.mxu0 0.0
  %373 = vmatprep.subr.mxu0 0.0
  %374 = vmatpush2.msra.mxu0 0.0
  %375 = vmatprep.subr.mxu0 0.0
  %376 = vmatpush2.msra.mxu0 0.0
  %377 = vmatprep.subr.mxu0 0.0
  %378 = vmatpush2.msra.mxu0 0.0
  %379 = vmatprep.subr.mxu0 0.0
  %380 = vmatpush2.msra.mxu0 0.0
  %381 = vmatprep.subr.mxu0 0.0
  %382 = vmatpush2.msra.mxu0 0.0
  %383 = vmatprep.subr.mxu0 0.0
  %384 = vmatpush2.msra.mxu0 0.0
  %385 = vmatprep.subr.mxu0 0.0
  %386 = vmatpush2.msra.mxu0 0.0
  %387 = vmatprep.subr.mxu0 0.0
  %388 = vmatpush2.msra.mxu0 0.0
  %389 = vmatprep.subr.mxu0 0.0
  %390 = vmatpush2.msra.mxu0 0.0
  %391 = vmatprep.mubr.f32.mxu0 0.0
  %392 = vmatmul.mubr.f32.gmra.mxu0 %v231
  %v393 = vpop.f32.mrf.mxu0
  %v394 = vadd.f32 0.0, %v393
  %v395 = vpop.f32.mrf.mxu0
  %396 = vdwg.mxu0
  %v397 = vadd.f32 %v151, %v394
  %v398 = vxor.u32 %v397, 2147483648
  %v399 = vmul.f32 %v398, 1.442695
  %v400 = vpow.pop %v399
  %v401 = vadd.f32 %v400, 1.0
  %v402 = vrcp.pop %v401
  %v403 = vmul.f32 1.0, %v402
  %v404 = vtanh.pop %v397
  %v405 = vmul.f32 %v403, %v214
  %407 = vrot.lane.b32.xlu0 %v404, 64
  %v408 = vpop.permute.xlu0 %407
  %v410 = vmul.f32 %v403, %v408
  %412 = vrot.lane.b32.xlu0 %v410, 32
  %v413 = vpop.permute.xlu0 %412
  %v415 = vadd.f32 %v405, %v413
  %v416 = vtanh.pop %v415
  %418 = vrot.lane.b32.xlu0 %v416, 64
  %v419 = vpop.permute.xlu0 %418
  %v421 = vmul.f32 %v403, %v419
  %423 = vrot.lane.b32.xlu0 %v421, 32
  %v424 = vpop.permute.xlu0 %423
  %v425 = vsel %vm230, %v424, 0
  %427 = vmatprep.subr.mxu0 0.0
  %428 = vmatpush1.msra.mxu0 0.0
  %429 = vmatprep.subr.mxu0 0.0
  %430 = vmatpush1.msra.mxu0 0.0
  %431 = vmatprep.subr.mxu0 0.0
  %432 = vmatpush1.msra.mxu0 0.0
  %433 = vmatprep.subr.mxu0 0.0
  %434 = vmatpush1.msra.mxu0 0.0
  %435 = vmatprep.subr.mxu0 0.0
  %436 = vmatpush1.msra.mxu0 0.0
  %437 = vmatprep.subr.mxu0 0.0
  %438 = vmatpush1.msra.mxu0 0.0
  %439 = vmatprep.subr.mxu0 0.0
  %440 = vmatpush1.msra.mxu0 0.0
  %441 = vmatprep.subr.mxu0 0.0
  %442 = vmatpush1.msra.mxu0 0.0
  %443 = vmatprep.subr.mxu0 0.0
  %444 = vmatpush1.msra.mxu0 0.0
  %445 = vmatprep.subr.mxu0 0.0
  %446 = vmatpush1.msra.mxu0 0.0
  %447 = vmatprep.subr.mxu0 0.0
  %448 = vmatpush1.msra.mxu0 0.0
  %449 = vmatprep.subr.mxu0 0.0
  %450 = vmatpush1.msra.mxu0 0.0
  %451 = vmatprep.subr.mxu0 0.0
  %452 = vmatpush1.msra.mxu0 %v191
  %453 = vmatprep.subr.mxu0 0.0
  %454 = vmatpush1.msra.mxu0 %v190
  %455 = vmatprep.subr.mxu0 0.0
  %456 = vmatpush1.msra.mxu0 %v189
  %457 = vmatprep.subr.mxu0 0.0
  %458 = vmatpush1.msra.mxu0 %v188
  %459 = vmatprep.subr.mxu0 0.0
  %460 = vmatpush2.msra.mxu0 0.0
  %461 = vmatprep.subr.mxu0 0.0
  %462 = vmatpush2.msra.mxu0 0.0
  %463 = vmatprep.subr.mxu0 0.0
  %464 = vmatpush2.msra.mxu0 0.0
  %465 = vmatprep.subr.mxu0 0.0
  %466 = vmatpush2.msra.mxu0 0.0
  %467 = vmatprep.subr.mxu0 0.0
  %468 = vmatpush2.msra.mxu0 0.0
  %469 = vmatprep.subr.mxu0 0.0
  %470 = vmatpush2.msra.mxu0 0.0
  %471 = vmatprep.subr.mxu0 0.0
  %472 = vmatpush2.msra.mxu0 0.0
  %473 = vmatprep.subr.mxu0 0.0
  %474 = vmatpush2.msra.mxu0 0.0
  %475 = vmatprep.subr.mxu0 0.0
  %476 = vmatpush2.msra.mxu0 0.0
  %477 = vmatprep.subr.mxu0 0.0
  %478 = vmatpush2.msra.mxu0 0.0
  %479 = vmatprep.subr.mxu0 0.0
  %480 = vmatpush2.msra.mxu0 0.0
  %481 = vmatprep.subr.mxu0 0.0
  %482 = vmatpush2.msra.mxu0 0.0
  %483 = vmatprep.subr.mxu0 0.0
  %484 = vmatpush2.msra.mxu0 0.0
  %485 = vmatprep.subr.mxu0 0.0
  %486 = vmatpush2.msra.mxu0 0.0
  %487 = vmatprep.subr.mxu0 0.0
  %488 = vmatpush2.msra.mxu0 0.0
  %489 = vmatprep.subr.mxu0 0.0
  %490 = vmatpush2.msra.mxu0 0.0
  %491 = vmatprep.mubr.f32.mxu0 0.0
  %492 = vmatmul.mubr.f32.gmra.mxu0 %v425
  %v493 = vpop.f32.mrf.mxu0
  %v494 = vadd.f32 %v225, %v493
  %v495 = vpop.f32.mrf.mxu0
  %496 = vdwg.mxu0
  %498 = vrot.lane.b32.xlu0 %v326, 32
  %v499 = vpop.permute.xlu0 %498
  %v500 = vsel %vm230, %v499, 0
  %502 = vmatprep.subr.mxu0 0.0
  %503 = vmatpush1.msra.mxu0 0.0
  %504 = vmatprep.subr.mxu0 0.0
  %505 = vmatpush1.msra.mxu0 0.0
  %506 = vmatprep.subr.mxu0 0.0
  %507 = vmatpush1.msra.mxu0 0.0
  %508 = vmatprep.subr.mxu0 0.0
  %509 = vmatpush1.msra.mxu0 0.0
  %510 = vmatprep.subr.mxu0 0.0
  %511 = vmatpush1.msra.mxu0 0.0
  %512 = vmatprep.subr.mxu0 0.0
  %513 = vmatpush1.msra.mxu0 0.0
  %514 = vmatprep.subr.mxu0 0.0
  %515 = vmatpush1.msra.mxu0 0.0
  %516 = vmatprep.subr.mxu0 0.0
  %517 = vmatpush1.msra.mxu0 0.0
  %518 = vmatprep.subr.mxu0 0.0
  %519 = vmatpush1.msra.mxu0 0.0
  %520 = vmatprep.subr.mxu0 0.0
  %521 = vmatpush1.msra.mxu0 0.0
  %522 = vmatprep.subr.mxu0 0.0
  %523 = vmatpush1.msra.mxu0 0.0
  %524 = vmatprep.subr.mxu0 0.0
  %525 = vmatpush1.msra.mxu0 0.0
  %526 = vmatprep.subr.mxu0 0.0
  %527 = vmatpush1.msra.mxu0 %v195
  %528 = vmatprep.subr.mxu0 0.0
  %529 = vmatpush1.msra.mxu0 %v194
  %530 = vmatprep.subr.mxu0 0.0
  %531 = vmatpush1.msra.mxu0 %v193
  %532 = vmatprep.subr.mxu0 0.0
  %533 = vmatpush1.msra.mxu0 %v192
  %534 = vmatprep.subr.mxu0 0.0
  %535 = vmatpush2.msra.mxu0 0.0
  %536 = vmatprep.subr.mxu0 0.0
  %537 = vmatpush2.msra.mxu0 0.0
  %538 = vmatprep.subr.mxu0 0.0
  %539 = vmatpush2.msra.mxu0 0.0
  %540 = vmatprep.subr.mxu0 0.0
  %541 = vmatpush2.msra.mxu0 0.0
  %542 = vmatprep.subr.mxu0 0.0
  %543 = vmatpush2.msra.mxu0 0.0
  %544 = vmatprep.subr.mxu0 0.0
  %545 = vmatpush2.msra.mxu0 0.0
  %546 = vmatprep.subr.mxu0 0.0
  %547 = vmatpush2.msra.mxu0 0.0
  %548 = vmatprep.subr.mxu0 0.0
  %549 = vmatpush2.msra.mxu0 0.0
  %550 = vmatprep.subr.mxu0 0.0
  %551 = vmatpush2.msra.mxu0 0.0
  %552 = vmatprep.subr.mxu0 0.0
  %553 = vmatpush2.msra.mxu0 0.0
  %554 = vmatprep.subr.mxu0 0.0
  %555 = vmatpush2.msra.mxu0 0.0
  %556 = vmatprep.subr.mxu0 0.0
  %557 = vmatpush2.msra.mxu0 0.0
  %558 = vmatprep.subr.mxu0 0.0
  %559 = vmatpush2.msra.mxu0 0.0
  %560 = vmatprep.subr.mxu0 0.0
  %561 = vmatpush2.msra.mxu0 0.0
  %562 = vmatprep.subr.mxu0 0.0
  %563 = vmatpush2.msra.mxu0 0.0
  %564 = vmatprep.subr.mxu0 0.0
  %565 = vmatpush2.msra.mxu0 0.0
  %566 = vmatprep.mubr.f32.mxu0 0.0
  %567 = vmatmul.mubr.f32.gmra.mxu0 %v500
  %v568 = vpop.f32.mrf.mxu0
  %v569 = vadd.f32 0.0, %v568
  %v570 = vpop.f32.mrf.mxu0
  %571 = vdwg.mxu0
  %v572 = vadd.f32 %v494, %v569
  %v573 = vxor.u32 %v572, 2147483648
  %v574 = vmul.f32 %v573, 1.442695
  %v575 = vpow.pop %v574
  %v576 = vadd.f32 %v575, 1.0
  %v577 = vrcp.pop %v576
  %v578 = vmul.f32 1.0, %v577
  %v579 = vtanh.pop %v572
  %v580 = vmul.f32 %v578, %v320
  %582 = vrot.lane.b32.xlu0 %v579, 64
  %v583 = vpop.permute.xlu0 %582
  %v585 = vmul.f32 %v578, %v583
  %587 = vrot.lane.b32.xlu0 %v585, 32
  %v588 = vpop.permute.xlu0 %587
  %v590 = vadd.f32 %v580, %v588
  %v591 = vtanh.pop %v590
  %593 = vrot.lane.b32.xlu0 %v591, 64
  %v594 = vpop.permute.xlu0 %593
  %v596 = vmul.f32 %v578, %v594
  %597 = vmatprep.subr.mxu0 0.0
  %598 = vmatpush1.msra.mxu0 0.0
  %599 = vmatprep.subr.mxu0 0.0
  %600 = vmatpush1.msra.mxu0 0.0
  %601 = vmatprep.subr.mxu0 0.0
  %602 = vmatpush1.msra.mxu0 0.0
  %603 = vmatprep.subr.mxu0 0.0
  %604 = vmatpush1.msra.mxu0 0.0
  %605 = vmatprep.subr.mxu0 0.0
  %606 = vmatpush1.msra.mxu0 0.0
  %607 = vmatprep.subr.mxu0 0.0
  %608 = vmatpush1.msra.mxu0 0.0
  %609 = vmatprep.subr.mxu0 0.0
  %610 = vmatpush1.msra.mxu0 0.0
  %611 = vmatprep.subr.mxu0 0.0
  %612 = vmatpush1.msra.mxu0 0.0
  %613 = vmatprep.subr.mxu0 0.0
  %614 = vmatpush1.msra.mxu0 0.0
  %615 = vmatprep.subr.mxu0 0.0
  %616 = vmatpush1.msra.mxu0 0.0
  %617 = vmatprep.subr.mxu0 0.0
  %618 = vmatpush1.msra.mxu0 0.0
  %619 = vmatprep.subr.mxu0 0.0
  %620 = vmatpush1.msra.mxu0 0.0
  %621 = vmatprep.subr.mxu0 0.0
  %622 = vmatpush1.msra.mxu0 %v187
  %623 = vmatprep.subr.mxu0 0.0
  %624 = vmatpush1.msra.mxu0 %v186
  %625 = vmatprep.subr.mxu0 0.0
  %626 = vmatpush1.msra.mxu0 %v185
  %627 = vmatprep.subr.mxu0 0.0
  %628 = vmatpush1.msra.mxu0 %v184
  %629 = vmatprep.subr.mxu0 0.0
  %630 = vmatpush2.msra.mxu0 0.0
  %631 = vmatprep.subr.mxu0 0.0
  %632 = vmatpush2.msra.mxu0 0.0
  %633 = vmatprep.subr.mxu0 0.0
  %634 = vmatpush2.msra.mxu0 0.0
  %635 = vmatprep.subr.mxu0 0.0
  %636 = vmatpush2.msra.mxu0 0.0
  %637 = vmatprep.subr.mxu0 0.0
  %638 = vmatpush2.msra.mxu0 0.0
  %639 = vmatprep.subr.mxu0 0.0
  %640 = vmatpush2.msra.mxu0 0.0
  %641 = vmatprep.subr.mxu0 0.0
  %642 = vmatpush2.msra.mxu0 0.0
  %643 = vmatprep.subr.mxu0 0.0
  %644 = vmatpush2.msra.mxu0 0.0
  %645 = vmatprep.subr.mxu0 0.0
  %646 = vmatpush2.msra.mxu0 0.0
  %647 = vmatprep.subr.mxu0 0.0
  %648 = vmatpush2.msra.mxu0 0.0
  %649 = vmatprep.subr.mxu0 0.0
  %650 = vmatpush2.msra.mxu0 0.0
  %651 = vmatprep.subr.mxu0 0.0
  %652 = vmatpush2.msra.mxu0 0.0
  %653 = vmatprep.subr.mxu0 0.0
  %654 = vmatpush2.msra.mxu0 0.0
  %655 = vmatprep.subr.mxu0 0.0
  %656 = vmatpush2.msra.mxu0 0.0
  %657 = vmatprep.subr.mxu0 0.0
  %658 = vmatpush2.msra.mxu0 0.0
  %659 = vmatprep.subr.mxu0 0.0
  %660 = vmatpush2.msra.mxu0 0.0
  %661 = vmatprep.mubr.f32.mxu0 0.0
  %662 = vmatmul.mubr.f32.gmra.mxu0 %v425
  %v663 = vpop.f32.mrf.mxu0
  %v664 = vadd.f32 0.0, %v663
  %v665 = vpop.f32.mrf.mxu0
  %666 = vdwg.mxu0
  %v667 = vadd.f32 %v156, %v664
  %v668 = vxor.u32 %v667, 2147483648
  %v669 = vmul.f32 %v668, 1.442695
  %v670 = vpow.pop %v669
  %v671 = vadd.f32 %v670, 1.0
  %v672 = vrcp.pop %v671
  %v673 = vmul.f32 1.0, %v672
  %v674 = vtanh.pop %v667
  %v675 = vmul.f32 %v673, %v415
  %677 = vrot.lane.b32.xlu0 %v674, 64
  %v678 = vpop.permute.xlu0 %677
  %v680 = vmul.f32 %v673, %v678
  %682 = vrot.lane.b32.xlu0 %v680, 32
  %v683 = vpop.permute.xlu0 %682
  %v685 = vadd.f32 %v675, %v683
  %v686 = vtanh.pop %v685
  %688 = vrot.lane.b32.xlu0 %v686, 64
  %v689 = vpop.permute.xlu0 %688
  %v691 = vmul.f32 %v673, %v689
  %693 = vrot.lane.b32.xlu0 %v691, 32
  %v694 = vpop.permute.xlu0 %693
  %v695 = vsel %vm230, %v694, 0
  %697 = vmatprep.subr.mxu0 0.0
  %698 = vmatpush1.msra.mxu0 0.0
  %699 = vmatprep.subr.mxu0 0.0
  %700 = vmatpush1.msra.mxu0 0.0
  %701 = vmatprep.subr.mxu0 0.0
  %702 = vmatpush1.msra.mxu0 0.0
  %703 = vmatprep.subr.mxu0 0.0
  %704 = vmatpush1.msra.mxu0 0.0
  %705 = vmatprep.subr.mxu0 0.0
  %706 = vmatpush1.msra.mxu0 0.0
  %707 = vmatprep.subr.mxu0 0.0
  %708 = vmatpush1.msra.mxu0 0.0
  %709 = vmatprep.subr.mxu0 0.0
  %710 = vmatpush1.msra.mxu0 0.0
  %711 = vmatprep.subr.mxu0 0.0
  %712 = vmatpush1.msra.mxu0 0.0
  %713 = vmatprep.subr.mxu0 0.0
  %714 = vmatpush1.msra.mxu0 0.0
  %715 = vmatprep.subr.mxu0 0.0
  %716 = vmatpush1.msra.mxu0 0.0
  %717 = vmatprep.subr.mxu0 0.0
  %718 = vmatpush1.msra.mxu0 0.0
  %719 = vmatprep.subr.mxu0 0.0
  %720 = vmatpush1.msra.mxu0 0.0
  %721 = vmatprep.subr.mxu0 0.0
  %722 = vmatpush1.msra.mxu0 %v191
  %723 = vmatprep.subr.mxu0 0.0
  %724 = vmatpush1.msra.mxu0 %v190
  %725 = vmatprep.subr.mxu0 0.0
  %726 = vmatpush1.msra.mxu0 %v189
  %727 = vmatprep.subr.mxu0 0.0
  %728 = vmatpush1.msra.mxu0 %v188
  %729 = vmatprep.subr.mxu0 0.0
  %730 = vmatpush2.msra.mxu0 0.0
  %731 = vmatprep.subr.mxu0 0.0
  %732 = vmatpush2.msra.mxu0 0.0
  %733 = vmatprep.subr.mxu0 0.0
  %734 = vmatpush2.msra.mxu0 0.0
  %735 = vmatprep.subr.mxu0 0.0
  %736 = vmatpush2.msra.mxu0 0.0
  %737 = vmatprep.subr.mxu0 0.0
  %738 = vmatpush2.msra.mxu0 0.0
  %739 = vmatprep.subr.mxu0 0.0
  %740 = vmatpush2.msra.mxu0 0.0
  %741 = vmatprep.subr.mxu0 0.0
  %742 = vmatpush2.msra.mxu0 0.0
  %743 = vmatprep.subr.mxu0 0.0
  %744 = vmatpush2.msra.mxu0 0.0
  %745 = vmatprep.subr.mxu0 0.0
  %746 = vmatpush2.msra.mxu0 0.0
  %747 = vmatprep.subr.mxu0 0.0
  %748 = vmatpush2.msra.mxu0 0.0
  %749 = vmatprep.subr.mxu0 0.0
  %750 = vmatpush2.msra.mxu0 0.0
  %751 = vmatprep.subr.mxu0 0.0
  %752 = vmatpush2.msra.mxu0 0.0
  %753 = vmatprep.subr.mxu0 0.0
  %754 = vmatpush2.msra.mxu0 0.0
  %755 = vmatprep.subr.mxu0 0.0
  %756 = vmatpush2.msra.mxu0 0.0
  %757 = vmatprep.subr.mxu0 0.0
  %758 = vmatpush2.msra.mxu0 0.0
  %759 = vmatprep.subr.mxu0 0.0
  %760 = vmatpush2.msra.mxu0 0.0
  %761 = vmatprep.mubr.f32.mxu0 0.0
  %762 = vmatmul.mubr.f32.gmra.mxu0 %v695
  %v763 = vpop.f32.mrf.mxu0
  %v764 = vadd.f32 %v225, %v763
  %v765 = vpop.f32.mrf.mxu0
  %766 = vdwg.mxu0
  %768 = vrot.lane.b32.xlu0 %v596, 32
  %v769 = vpop.permute.xlu0 %768
  %v770 = vsel %vm230, %v769, 0
  %772 = vmatprep.subr.mxu0 0.0
  %773 = vmatpush1.msra.mxu0 0.0
  %774 = vmatprep.subr.mxu0 0.0
  %775 = vmatpush1.msra.mxu0 0.0
  %776 = vmatprep.subr.mxu0 0.0
  %777 = vmatpush1.msra.mxu0 0.0
  %778 = vmatprep.subr.mxu0 0.0
  %779 = vmatpush1.msra.mxu0 0.0
  %780 = vmatprep.subr.mxu0 0.0
  %781 = vmatpush1.msra.mxu0 0.0
  %782 = vmatprep.subr.mxu0 0.0
  %783 = vmatpush1.msra.mxu0 0.0
  %784 = vmatprep.subr.mxu0 0.0
  %785 = vmatpush1.msra.mxu0 0.0
  %786 = vmatprep.subr.mxu0 0.0
  %787 = vmatpush1.msra.mxu0 0.0
  %788 = vmatprep.subr.mxu0 0.0
  %789 = vmatpush1.msra.mxu0 0.0
  %790 = vmatprep.subr.mxu0 0.0
  %791 = vmatpush1.msra.mxu0 0.0
  %792 = vmatprep.subr.mxu0 0.0
  %793 = vmatpush1.msra.mxu0 0.0
  %794 = vmatprep.subr.mxu0 0.0
  %795 = vmatpush1.msra.mxu0 0.0
  %796 = vmatprep.subr.mxu0 0.0
  %797 = vmatpush1.msra.mxu0 %v195
  %798 = vmatprep.subr.mxu0 0.0
  %799 = vmatpush1.msra.mxu0 %v194
  %800 = vmatprep.subr.mxu0 0.0
  %801 = vmatpush1.msra.mxu0 %v193
  %802 = vmatprep.subr.mxu0 0.0
  %803 = vmatpush1.msra.mxu0 %v192
  %804 = vmatprep.subr.mxu0 0.0
  %805 = vmatpush2.msra.mxu0 0.0
  %806 = vmatprep.subr.mxu0 0.0
  %807 = vmatpush2.msra.mxu0 0.0
  %808 = vmatprep.subr.mxu0 0.0
  %809 = vmatpush2.msra.mxu0 0.0
  %810 = vmatprep.subr.mxu0 0.0
  %811 = vmatpush2.msra.mxu0 0.0
  %812 = vmatprep.subr.mxu0 0.0
  %813 = vmatpush2.msra.mxu0 0.0
  %814 = vmatprep.subr.mxu0 0.0
  %815 = vmatpush2.msra.mxu0 0.0
  %816 = vmatprep.subr.mxu0 0.0
  %817 = vmatpush2.msra.mxu0 0.0
  %818 = vmatprep.subr.mxu0 0.0
  %819 = vmatpush2.msra.mxu0 0.0
  %820 = vmatprep.subr.mxu0 0.0
  %821 = vmatpush2.msra.mxu0 0.0
  %822 = vmatprep.subr.mxu0 0.0
  %823 = vmatpush2.msra.mxu0 0.0
  %824 = vmatprep.subr.mxu0 0.0
  %825 = vmatpush2.msra.mxu0 0.0
  %826 = vmatprep.subr.mxu0 0.0
  %827 = vmatpush2.msra.mxu0 0.0
  %828 = vmatprep.subr.mxu0 0.0
  %829 = vmatpush2.msra.mxu0 0.0
  %830 = vmatprep.subr.mxu0 0.0
  %831 = vmatpush2.msra.mxu0 0.0
  %832 = vmatprep.subr.mxu0 0.0
  %833 = vmatpush2.msra.mxu0 0.0
  %834 = vmatprep.subr.mxu0 0.0
  %835 = vmatpush2.msra.mxu0 0.0
  %836 = vmatprep.mubr.f32.mxu0 0.0
  %837 = vmatmul.mubr.f32.gmra.mxu0 %v770
  %v838 = vpop.f32.mrf.mxu0
  %v839 = vadd.f32 0.0, %v838
  %v840 = vpop.f32.mrf.mxu0
  %841 = vdwg.mxu0
  %v842 = vadd.f32 %v764, %v839
  %v843 = vxor.u32 %v842, 2147483648
  %v844 = vmul.f32 %v843, 1.442695
  %v845 = vpow.pop %v844
  %v846 = vadd.f32 %v845, 1.0
  %v847 = vrcp.pop %v846
  %v848 = vmul.f32 1.0, %v847
  %v849 = vtanh.pop %v842
  %v850 = vmul.f32 %v848, %v590
  %852 = vrot.lane.b32.xlu0 %v849, 64
  %v853 = vpop.permute.xlu0 %852
  %v855 = vmul.f32 %v848, %v853
  %857 = vrot.lane.b32.xlu0 %v855, 32
  %v858 = vpop.permute.xlu0 %857
  %v860 = vadd.f32 %v850, %v858
  %v861 = vtanh.pop %v860
  %863 = vrot.lane.b32.xlu0 %v861, 64
  %v864 = vpop.permute.xlu0 %863
  %v866 = vmul.f32 %v848, %v864
  %867 = vmatprep.subr.mxu0 0.0
  %868 = vmatpush1.msra.mxu0 0.0
  %869 = vmatprep.subr.mxu0 0.0
  %870 = vmatpush1.msra.mxu0 0.0
  %871 = vmatprep.subr.mxu0 0.0
  %872 = vmatpush1.msra.mxu0 0.0
  %873 = vmatprep.subr.mxu0 0.0
  %874 = vmatpush1.msra.mxu0 0.0
  %875 = vmatprep.subr.mxu0 0.0
  %876 = vmatpush1.msra.mxu0 0.0
  %877 = vmatprep.subr.mxu0 0.0
  %878 = vmatpush1.msra.mxu0 0.0
  %879 = vmatprep.subr.mxu0 0.0
  %880 = vmatpush1.msra.mxu0 0.0
  %881 = vmatprep.subr.mxu0 0.0
  %882 = vmatpush1.msra.mxu0 0.0
  %883 = vmatprep.subr.mxu0 0.0
  %884 = vmatpush1.msra.mxu0 0.0
  %885 = vmatprep.subr.mxu0 0.0
  %886 = vmatpush1.msra.mxu0 0.0
  %887 = vmatprep.subr.mxu0 0.0
  %888 = vmatpush1.msra.mxu0 0.0
  %889 = vmatprep.subr.mxu0 0.0
  %890 = vmatpush1.msra.mxu0 0.0
  %891 = vmatprep.subr.mxu0 0.0
  %892 = vmatpush1.msra.mxu0 %v187
  %893 = vmatprep.subr.mxu0 0.0
  %894 = vmatpush1.msra.mxu0 %v186
  %895 = vmatprep.subr.mxu0 0.0
  %896 = vmatpush1.msra.mxu0 %v185
  %897 = vmatprep.subr.mxu0 0.0
  %898 = vmatpush1.msra.mxu0 %v184
  %899 = vmatprep.subr.mxu0 0.0
  %900 = vmatpush2.msra.mxu0 0.0
  %901 = vmatprep.subr.mxu0 0.0
  %902 = vmatpush2.msra.mxu0 0.0
  %903 = vmatprep.subr.mxu0 0.0
  %904 = vmatpush2.msra.mxu0 0.0
  %905 = vmatprep.subr.mxu0 0.0
  %906 = vmatpush2.msra.mxu0 0.0
  %907 = vmatprep.subr.mxu0 0.0
  %908 = vmatpush2.msra.mxu0 0.0
  %909 = vmatprep.subr.mxu0 0.0
  %910 = vmatpush2.msra.mxu0 0.0
  %911 = vmatprep.subr.mxu0 0.0
  %912 = vmatpush2.msra.mxu0 0.0
  %913 = vmatprep.subr.mxu0 0.0
  %914 = vmatpush2.msra.mxu0 0.0
  %915 = vmatprep.subr.mxu0 0.0
  %916 = vmatpush2.msra.mxu0 0.0
  %917 = vmatprep.subr.mxu0 0.0
  %918 = vmatpush2.msra.mxu0 0.0
  %919 = vmatprep.subr.mxu0 0.0
  %920 = vmatpush2.msra.mxu0 0.0
  %921 = vmatprep.subr.mxu0 0.0
  %922 = vmatpush2.msra.mxu0 0.0
  %923 = vmatprep.subr.mxu0 0.0
  %924 = vmatpush2.msra.mxu0 0.0
  %925 = vmatprep.subr.mxu0 0.0
  %926 = vmatpush2.msra.mxu0 0.0
  %927 = vmatprep.subr.mxu0 0.0
  %928 = vmatpush2.msra.mxu0 0.0
  %929 = vmatprep.subr.mxu0 0.0
  %930 = vmatpush2.msra.mxu0 0.0
  %931 = vmatprep.mubr.f32.mxu0 0.0
  %932 = vmatmul.mubr.f32.gmra.mxu0 %v695
  %v933 = vpop.f32.mrf.mxu0
  %v934 = vadd.f32 0.0, %v933
  %v935 = vpop.f32.mrf.mxu0
  %936 = vdwg.mxu0
  %v937 = vadd.f32 %v161, %v934
  %v938 = vxor.u32 %v937, 2147483648
  %v939 = vmul.f32 %v938, 1.442695
  %v940 = vpow.pop %v939
  %v941 = vadd.f32 %v940, 1.0
  %v942 = vrcp.pop %v941
  %v943 = vmul.f32 1.0, %v942
  %v944 = vtanh.pop %v937
  %v945 = vmul.f32 %v943, %v685
  %947 = vrot.lane.b32.xlu0 %v944, 64
  %v948 = vpop.permute.xlu0 %947
  %v950 = vmul.f32 %v943, %v948
  %952 = vrot.lane.b32.xlu0 %v950, 32
  %v953 = vpop.permute.xlu0 %952
  %v955 = vadd.f32 %v945, %v953
  %v956 = vtanh.pop %v955
  %958 = vrot.lane.b32.xlu0 %v956, 64
  %v959 = vpop.permute.xlu0 %958
  %v961 = vmul.f32 %v943, %v959
  %963 = vrot.lane.b32.xlu0 %v961, 32
  %v964 = vpop.permute.xlu0 %963
  %v965 = vsel %vm230, %v964, 0
  %967 = vmatprep.subr.mxu0 0.0
  %968 = vmatpush1.msra.mxu0 0.0
  %969 = vmatprep.subr.mxu0 0.0
  %970 = vmatpush1.msra.mxu0 0.0
  %971 = vmatprep.subr.mxu0 0.0
  %972 = vmatpush1.msra.mxu0 0.0
  %973 = vmatprep.subr.mxu0 0.0
  %974 = vmatpush1.msra.mxu0 0.0
  %975 = vmatprep.subr.mxu0 0.0
  %976 = vmatpush1.msra.mxu0 0.0
  %977 = vmatprep.subr.mxu0 0.0
  %978 = vmatpush1.msra.mxu0 0.0
  %979 = vmatprep.subr.mxu0 0.0
  %980 = vmatpush1.msra.mxu0 0.0
  %981 = vmatprep.subr.mxu0 0.0
  %982 = vmatpush1.msra.mxu0 0.0
  %983 = vmatprep.subr.mxu0 0.0
  %984 = vmatpush1.msra.mxu0 0.0
  %985 = vmatprep.subr.mxu0 0.0
  %986 = vmatpush1.msra.mxu0 0.0
  %987 = vmatprep.subr.mxu0 0.0
  %988 = vmatpush1.msra.mxu0 0.0
  %989 = vmatprep.subr.mxu0 0.0
  %990 = vmatpush1.msra.mxu0 0.0
  %991 = vmatprep.subr.mxu0 0.0
  %992 = vmatpush1.msra.mxu0 %v191
  %993 = vmatprep.subr.mxu0 0.0
  %994 = vmatpush1.msra.mxu0 %v190
  %995 = vmatprep.subr.mxu0 0.0
  %996 = vmatpush1.msra.mxu0 %v189
  %997 = vmatprep.subr.mxu0 0.0
  %998 = vmatpush1.msra.mxu0 %v188
  %999 = vmatprep.subr.mxu0 0.0
  %1000 = vmatpush2.msra.mxu0 0.0
  %1001 = vmatprep.subr.mxu0 0.0
  %1002 = vmatpush2.msra.mxu0 0.0
  %1003 = vmatprep.subr.mxu0 0.0
  %1004 = vmatpush2.msra.mxu0 0.0
  %1005 = vmatprep.subr.mxu0 0.0
  %1006 = vmatpush2.msra.mxu0 0.0
  %1007 = vmatprep.subr.mxu0 0.0
  %1008 = vmatpush2.msra.mxu0 0.0
  %1009 = vmatprep.subr.mxu0 0.0
  %1010 = vmatpush2.msra.mxu0 0.0
  %1011 = vmatprep.subr.mxu0 0.0
  %1012 = vmatpush2.msra.mxu0 0.0
  %1013 = vmatprep.subr.mxu0 0.0
  %1014 = vmatpush2.msra.mxu0 0.0
  %1015 = vmatprep.subr.mxu0 0.0
  %1016 = vmatpush2.msra.mxu0 0.0
  %1017 = vmatprep.subr.mxu0 0.0
  %1018 = vmatpush2.msra.mxu0 0.0
  %1019 = vmatprep.subr.mxu0 0.0
  %1020 = vmatpush2.msra.mxu0 0.0
  %1021 = vmatprep.subr.mxu0 0.0
  %1022 = vmatpush2.msra.mxu0 0.0
  %1023 = vmatprep.subr.mxu0 0.0
  %1024 = vmatpush2.msra.mxu0 0.0
  %1025 = vmatprep.subr.mxu0 0.0
  %1026 = vmatpush2.msra.mxu0 0.0
  %1027 = vmatprep.subr.mxu0 0.0
  %1028 = vmatpush2.msra.mxu0 0.0
  %1029 = vmatprep.subr.mxu0 0.0
  %1030 = vmatpush2.msra.mxu0 0.0
  %1031 = vmatprep.mubr.f32.mxu0 0.0
  %1032 = vmatmul.mubr.f32.gmra.mxu0 %v965
  %v1033 = vpop.f32.mrf.mxu0
  %v1034 = vadd.f32 %v225, %v1033
  %v1035 = vpop.f32.mrf.mxu0
  %1036 = vdwg.mxu0
  %1038 = vrot.lane.b32.xlu0 %v866, 32
  %v1039 = vpop.permute.xlu0 %1038
  %v1040 = vsel %vm230, %v1039, 0
  %1042 = vmatprep.subr.mxu0 0.0
  %1043 = vmatpush1.msra.mxu0 0.0
  %1044 = vmatprep.subr.mxu0 0.0
  %1045 = vmatpush1.msra.mxu0 0.0
  %1046 = vmatprep.subr.mxu0 0.0
  %1047 = vmatpush1.msra.mxu0 0.0
  %1048 = vmatprep.subr.mxu0 0.0
  %1049 = vmatpush1.msra.mxu0 0.0
  %1050 = vmatprep.subr.mxu0 0.0
  %1051 = vmatpush1.msra.mxu0 0.0
  %1052 = vmatprep.subr.mxu0 0.0
  %1053 = vmatpush1.msra.mxu0 0.0
  %1054 = vmatprep.subr.mxu0 0.0
  %1055 = vmatpush1.msra.mxu0 0.0
  %1056 = vmatprep.subr.mxu0 0.0
  %1057 = vmatpush1.msra.mxu0 0.0
  %1058 = vmatprep.subr.mxu0 0.0
  %1059 = vmatpush1.msra.mxu0 0.0
  %1060 = vmatprep.subr.mxu0 0.0
  %1061 = vmatpush1.msra.mxu0 0.0
  %1062 = vmatprep.subr.mxu0 0.0
  %1063 = vmatpush1.msra.mxu0 0.0
  %1064 = vmatprep.subr.mxu0 0.0
  %1065 = vmatpush1.msra.mxu0 0.0
  %1066 = vmatprep.subr.mxu0 0.0
  %1067 = vmatpush1.msra.mxu0 %v195
  %1068 = vmatprep.subr.mxu0 0.0
  %1069 = vmatpush1.msra.mxu0 %v194
  %1070 = vmatprep.subr.mxu0 0.0
  %1071 = vmatpush1.msra.mxu0 %v193
  %1072 = vmatprep.subr.mxu0 0.0
  %1073 = vmatpush1.msra.mxu0 %v192
  %1074 = vmatprep.subr.mxu0 0.0
  %1075 = vmatpush2.msra.mxu0 0.0
  %1076 = vmatprep.subr.mxu0 0.0
  %1077 = vmatpush2.msra.mxu0 0.0
  %1078 = vmatprep.subr.mxu0 0.0
  %1079 = vmatpush2.msra.mxu0 0.0
  %1080 = vmatprep.subr.mxu0 0.0
  %1081 = vmatpush2.msra.mxu0 0.0
  %1082 = vmatprep.subr.mxu0 0.0
  %1083 = vmatpush2.msra.mxu0 0.0
  %1084 = vmatprep.subr.mxu0 0.0
  %1085 = vmatpush2.msra.mxu0 0.0
  %1086 = vmatprep.subr.mxu0 0.0
  %1087 = vmatpush2.msra.mxu0 0.0
  %1088 = vmatprep.subr.mxu0 0.0
  %1089 = vmatpush2.msra.mxu0 0.0
  %1090 = vmatprep.subr.mxu0 0.0
  %1091 = vmatpush2.msra.mxu0 0.0
  %1092 = vmatprep.subr.mxu0 0.0
  %1093 = vmatpush2.msra.mxu0 0.0
  %1094 = vmatprep.subr.mxu0 0.0
  %1095 = vmatpush2.msra.mxu0 0.0
  %1096 = vmatprep.subr.mxu0 0.0
  %1097 = vmatpush2.msra.mxu0 0.0
  %1098 = vmatprep.subr.mxu0 0.0
  %1099 = vmatpush2.msra.mxu0 0.0
  %1100 = vmatprep.subr.mxu0 0.0
  %1101 = vmatpush2.msra.mxu0 0.0
  %1102 = vmatprep.subr.mxu0 0.0
  %1103 = vmatpush2.msra.mxu0 0.0
  %1104 = vmatprep.subr.mxu0 0.0
  %1105 = vmatpush2.msra.mxu0 0.0
  %1106 = vmatprep.mubr.f32.mxu0 0.0
  %1107 = vmatmul.mubr.f32.gmra.mxu0 %v1040
  %v1108 = vpop.f32.mrf.mxu0
  %v1109 = vadd.f32 0.0, %v1108
  %v1110 = vpop.f32.mrf.mxu0
  %1111 = vdwg.mxu0
  %v1112 = vadd.f32 %v1034, %v1109
  %v1113 = vxor.u32 %v1112, 2147483648
  %v1114 = vmul.f32 %v1113, 1.442695
  %v1115 = vpow.pop %v1114
  %v1116 = vadd.f32 %v1115, 1.0
  %v1117 = vrcp.pop %v1116
  %v1118 = vmul.f32 1.0, %v1117
  %v1119 = vtanh.pop %v1112
  %v1120 = vmul.f32 %v1118, %v860
  %1122 = vrot.lane.b32.xlu0 %v1119, 64
  %v1123 = vpop.permute.xlu0 %1122
  %v1125 = vmul.f32 %v1118, %v1123
  %1127 = vrot.lane.b32.xlu0 %v1125, 32
  %v1128 = vpop.permute.xlu0 %1127
  %v1130 = vadd.f32 %v1120, %v1128
  %v1131 = vtanh.pop %v1130
  %1133 = vrot.lane.b32.xlu0 %v1131, 64
  %v1134 = vpop.permute.xlu0 %1133
  %v1136 = vmul.f32 %v1118, %v1134
  %1137 = vmatprep.subr.mxu0 0.0
  %1138 = vmatpush1.msra.mxu0 0.0
  %1139 = vmatprep.subr.mxu0 0.0
  %1140 = vmatpush1.msra.mxu0 0.0
  %1141 = vmatprep.subr.mxu0 0.0
  %1142 = vmatpush1.msra.mxu0 0.0
  %1143 = vmatprep.subr.mxu0 0.0
  %1144 = vmatpush1.msra.mxu0 0.0
  %1145 = vmatprep.subr.mxu0 0.0
  %1146 = vmatpush1.msra.mxu0 0.0
  %1147 = vmatprep.subr.mxu0 0.0
  %1148 = vmatpush1.msra.mxu0 0.0
  %1149 = vmatprep.subr.mxu0 0.0
  %1150 = vmatpush1.msra.mxu0 0.0
  %1151 = vmatprep.subr.mxu0 0.0
  %1152 = vmatpush1.msra.mxu0 0.0
  %1153 = vmatprep.subr.mxu0 0.0
  %1154 = vmatpush1.msra.mxu0 0.0
  %1155 = vmatprep.subr.mxu0 0.0
  %1156 = vmatpush1.msra.mxu0 0.0
  %1157 = vmatprep.subr.mxu0 0.0
  %1158 = vmatpush1.msra.mxu0 0.0
  %1159 = vmatprep.subr.mxu0 0.0
  %1160 = vmatpush1.msra.mxu0 0.0
  %1161 = vmatprep.subr.mxu0 0.0
  %1162 = vmatpush1.msra.mxu0 %v187
  %1163 = vmatprep.subr.mxu0 0.0
  %1164 = vmatpush1.msra.mxu0 %v186
  %1165 = vmatprep.subr.mxu0 0.0
  %1166 = vmatpush1.msra.mxu0 %v185
  %1167 = vmatprep.subr.mxu0 0.0
  %1168 = vmatpush1.msra.mxu0 %v184
  %1169 = vmatprep.subr.mxu0 0.0
  %1170 = vmatpush2.msra.mxu0 0.0
  %1171 = vmatprep.subr.mxu0 0.0
  %1172 = vmatpush2.msra.mxu0 0.0
  %1173 = vmatprep.subr.mxu0 0.0
  %1174 = vmatpush2.msra.mxu0 0.0
  %1175 = vmatprep.subr.mxu0 0.0
  %1176 = vmatpush2.msra.mxu0 0.0
  %1177 = vmatprep.subr.mxu0 0.0
  %1178 = vmatpush2.msra.mxu0 0.0
  %1179 = vmatprep.subr.mxu0 0.0
  %1180 = vmatpush2.msra.mxu0 0.0
  %1181 = vmatprep.subr.mxu0 0.0
  %1182 = vmatpush2.msra.mxu0 0.0
  %1183 = vmatprep.subr.mxu0 0.0
  %1184 = vmatpush2.msra.mxu0 0.0
  %1185 = vmatprep.subr.mxu0 0.0
  %1186 = vmatpush2.msra.mxu0 0.0
  %1187 = vmatprep.subr.mxu0 0.0
  %1188 = vmatpush2.msra.mxu0 0.0
  %1189 = vmatprep.subr.mxu0 0.0
  %1190 = vmatpush2.msra.mxu0 0.0
  %1191 = vmatprep.subr.mxu0 0.0
  %1192 = vmatpush2.msra.mxu0 0.0
  %1193 = vmatprep.subr.mxu0 0.0
  %1194 = vmatpush2.msra.mxu0 0.0
  %1195 = vmatprep.subr.mxu0 0.0
  %1196 = vmatpush2.msra.mxu0 0.0
  %1197 = vmatprep.subr.mxu0 0.0
  %1198 = vmatpush2.msra.mxu0 0.0
  %1199 = vmatprep.subr.mxu0 0.0
  %1200 = vmatpush2.msra.mxu0 0.0
  %1201 = vmatprep.mubr.f32.mxu0 0.0
  %1202 = vmatmul.mubr.f32.gmra.mxu0 %v965
  %v1203 = vpop.f32.mrf.mxu0
  %v1204 = vadd.f32 0.0, %v1203
  %v1205 = vpop.f32.mrf.mxu0
  %1206 = vdwg.mxu0
  %v1207 = vadd.f32 %v166, %v1204
  %v1208 = vxor.u32 %v1207, 2147483648
  %v1209 = vmul.f32 %v1208, 1.442695
  %v1210 = vpow.pop %v1209
  %v1211 = vadd.f32 %v1210, 1.0
  %v1212 = vrcp.pop %v1211
  %v1213 = vmul.f32 1.0, %v1212
  %v1214 = vtanh.pop %v1207
  %v1215 = vmul.f32 %v1213, %v955
  %1217 = vrot.lane.b32.xlu0 %v1214, 64
  %v1218 = vpop.permute.xlu0 %1217
  %v1220 = vmul.f32 %v1213, %v1218
  %1222 = vrot.lane.b32.xlu0 %v1220, 32
  %v1223 = vpop.permute.xlu0 %1222
  %v1225 = vadd.f32 %v1215, %v1223
  %v1226 = vtanh.pop %v1225
  %1228 = vrot.lane.b32.xlu0 %v1226, 64
  %v1229 = vpop.permute.xlu0 %1228
  %v1231 = vmul.f32 %v1213, %v1229
  %1233 = vrot.lane.b32.xlu0 %v1231, 32
  %v1234 = vpop.permute.xlu0 %1233
  %v1235 = vsel %vm230, %v1234, 0
  %1237 = vmatprep.subr.mxu0 0.0
  %1238 = vmatpush1.msra.mxu0 0.0
  %1239 = vmatprep.subr.mxu0 0.0
  %1240 = vmatpush1.msra.mxu0 0.0
  %1241 = vmatprep.subr.mxu0 0.0
  %1242 = vmatpush1.msra.mxu0 0.0
  %1243 = vmatprep.subr.mxu0 0.0
  %1244 = vmatpush1.msra.mxu0 0.0
  %1245 = vmatprep.subr.mxu0 0.0
  %1246 = vmatpush1.msra.mxu0 0.0
  %1247 = vmatprep.subr.mxu0 0.0
  %1248 = vmatpush1.msra.mxu0 0.0
  %1249 = vmatprep.subr.mxu0 0.0
  %1250 = vmatpush1.msra.mxu0 0.0
  %1251 = vmatprep.subr.mxu0 0.0
  %1252 = vmatpush1.msra.mxu0 0.0
  %1253 = vmatprep.subr.mxu0 0.0
  %1254 = vmatpush1.msra.mxu0 0.0
  %1255 = vmatprep.subr.mxu0 0.0
  %1256 = vmatpush1.msra.mxu0 0.0
  %1257 = vmatprep.subr.mxu0 0.0
  %1258 = vmatpush1.msra.mxu0 0.0
  %1259 = vmatprep.subr.mxu0 0.0
  %1260 = vmatpush1.msra.mxu0 0.0
  %1261 = vmatprep.subr.mxu0 0.0
  %1262 = vmatpush1.msra.mxu0 %v191
  %1263 = vmatprep.subr.mxu0 0.0
  %1264 = vmatpush1.msra.mxu0 %v190
  %1265 = vmatprep.subr.mxu0 0.0
  %1266 = vmatpush1.msra.mxu0 %v189
  %1267 = vmatprep.subr.mxu0 0.0
  %1268 = vmatpush1.msra.mxu0 %v188
  %1269 = vmatprep.subr.mxu0 0.0
  %1270 = vmatpush2.msra.mxu0 0.0
  %1271 = vmatprep.subr.mxu0 0.0
  %1272 = vmatpush2.msra.mxu0 0.0
  %1273 = vmatprep.subr.mxu0 0.0
  %1274 = vmatpush2.msra.mxu0 0.0
  %1275 = vmatprep.subr.mxu0 0.0
  %1276 = vmatpush2.msra.mxu0 0.0
  %1277 = vmatprep.subr.mxu0 0.0
  %1278 = vmatpush2.msra.mxu0 0.0
  %1279 = vmatprep.subr.mxu0 0.0
  %1280 = vmatpush2.msra.mxu0 0.0
  %1281 = vmatprep.subr.mxu0 0.0
  %1282 = vmatpush2.msra.mxu0 0.0
  %1283 = vmatprep.subr.mxu0 0.0
  %1284 = vmatpush2.msra.mxu0 0.0
  %1285 = vmatprep.subr.mxu0 0.0
  %1286 = vmatpush2.msra.mxu0 0.0
  %1287 = vmatprep.subr.mxu0 0.0
  %1288 = vmatpush2.msra.mxu0 0.0
  %1289 = vmatprep.subr.mxu0 0.0
  %1290 = vmatpush2.msra.mxu0 0.0
  %1291 = vmatprep.subr.mxu0 0.0
  %1292 = vmatpush2.msra.mxu0 0.0
  %1293 = vmatprep.subr.mxu0 0.0
  %1294 = vmatpush2.msra.mxu0 0.0
  %1295 = vmatprep.subr.mxu0 0.0
  %1296 = vmatpush2.msra.mxu0 0.0
  %1297 = vmatprep.subr.mxu0 0.0
  %1298 = vmatpush2.msra.mxu0 0.0
  %1299 = vmatprep.subr.mxu0 0.0
  %1300 = vmatpush2.msra.mxu0 0.0
  %1301 = vmatprep.mubr.f32.mxu0 0.0
  %1302 = vmatmul.mubr.f32.gmra.mxu0 %v1235
  %v1303 = vpop.f32.mrf.mxu0
  %v1304 = vadd.f32 %v225, %v1303
  %v1305 = vpop.f32.mrf.mxu0
  %1306 = vdwg.mxu0
  %1308 = vrot.lane.b32.xlu0 %v1136, 32
  %v1309 = vpop.permute.xlu0 %1308
  %v1310 = vsel %vm230, %v1309, 0
  %1312 = vmatprep.subr.mxu0 0.0
  %1313 = vmatpush1.msra.mxu0 0.0
  %1314 = vmatprep.subr.mxu0 0.0
  %1315 = vmatpush1.msra.mxu0 0.0
  %1316 = vmatprep.subr.mxu0 0.0
  %1317 = vmatpush1.msra.mxu0 0.0
  %1318 = vmatprep.subr.mxu0 0.0
  %1319 = vmatpush1.msra.mxu0 0.0
  %1320 = vmatprep.subr.mxu0 0.0
  %1321 = vmatpush1.msra.mxu0 0.0
  %1322 = vmatprep.subr.mxu0 0.0
  %1323 = vmatpush1.msra.mxu0 0.0
  %1324 = vmatprep.subr.mxu0 0.0
  %1325 = vmatpush1.msra.mxu0 0.0
  %1326 = vmatprep.subr.mxu0 0.0
  %1327 = vmatpush1.msra.mxu0 0.0
  %1328 = vmatprep.subr.mxu0 0.0
  %1329 = vmatpush1.msra.mxu0 0.0
  %1330 = vmatprep.subr.mxu0 0.0
  %1331 = vmatpush1.msra.mxu0 0.0
  %1332 = vmatprep.subr.mxu0 0.0
  %1333 = vmatpush1.msra.mxu0 0.0
  %1334 = vmatprep.subr.mxu0 0.0
  %1335 = vmatpush1.msra.mxu0 0.0
  %1336 = vmatprep.subr.mxu0 0.0
  %1337 = vmatpush1.msra.mxu0 %v195
  %1338 = vmatprep.subr.mxu0 0.0
  %1339 = vmatpush1.msra.mxu0 %v194
  %1340 = vmatprep.subr.mxu0 0.0
  %1341 = vmatpush1.msra.mxu0 %v193
  %1342 = vmatprep.subr.mxu0 0.0
  %1343 = vmatpush1.msra.mxu0 %v192
  %1344 = vmatprep.subr.mxu0 0.0
  %1345 = vmatpush2.msra.mxu0 0.0
  %1346 = vmatprep.subr.mxu0 0.0
  %1347 = vmatpush2.msra.mxu0 0.0
  %1348 = vmatprep.subr.mxu0 0.0
  %1349 = vmatpush2.msra.mxu0 0.0
  %1350 = vmatprep.subr.mxu0 0.0
  %1351 = vmatpush2.msra.mxu0 0.0
  %1352 = vmatprep.subr.mxu0 0.0
  %1353 = vmatpush2.msra.mxu0 0.0
  %1354 = vmatprep.subr.mxu0 0.0
  %1355 = vmatpush2.msra.mxu0 0.0
  %1356 = vmatprep.subr.mxu0 0.0
  %1357 = vmatpush2.msra.mxu0 0.0
  %1358 = vmatprep.subr.mxu0 0.0
  %1359 = vmatpush2.msra.mxu0 0.0
  %1360 = vmatprep.subr.mxu0 0.0
  %1361 = vmatpush2.msra.mxu0 0.0
  %1362 = vmatprep.subr.mxu0 0.0
  %1363 = vmatpush2.msra.mxu0 0.0
  %1364 = vmatprep.subr.mxu0 0.0
  %1365 = vmatpush2.msra.mxu0 0.0
  %1366 = vmatprep.subr.mxu0 0.0
  %1367 = vmatpush2.msra.mxu0 0.0
  %1368 = vmatprep.subr.mxu0 0.0
  %1369 = vmatpush2.msra.mxu0 0.0
  %1370 = vmatprep.subr.mxu0 0.0
  %1371 = vmatpush2.msra.mxu0 0.0
  %1372 = vmatprep.subr.mxu0 0.0
  %1373 = vmatpush2.msra.mxu0 0.0
  %1374 = vmatprep.subr.mxu0 0.0
  %1375 = vmatpush2.msra.mxu0 0.0
  %1376 = vmatprep.mubr.f32.mxu0 0.0
  %1377 = vmatmul.mubr.f32.gmra.mxu0 %v1310
  %v1378 = vpop.f32.mrf.mxu0
  %v1379 = vadd.f32 0.0, %v1378
  %v1380 = vpop.f32.mrf.mxu0
  %1381 = vdwg.mxu0
  %v1382 = vadd.f32 %v1304, %v1379
  %v1383 = vxor.u32 %v1382, 2147483648
  %v1384 = vmul.f32 %v1383, 1.442695
  %v1385 = vpow.pop %v1384
  %v1386 = vadd.f32 %v1385, 1.0
  %v1387 = vrcp.pop %v1386
  %v1388 = vmul.f32 1.0, %v1387
  %v1389 = vtanh.pop %v1382
  %v1390 = vmul.f32 %v1388, %v1130
  %1392 = vrot.lane.b32.xlu0 %v1389, 64
  %v1393 = vpop.permute.xlu0 %1392
  %v1395 = vmul.f32 %v1388, %v1393
  %1397 = vrot.lane.b32.xlu0 %v1395, 32
  %v1398 = vpop.permute.xlu0 %1397
  %v1400 = vadd.f32 %v1390, %v1398
  %v1401 = vtanh.pop %v1400
  %1403 = vrot.lane.b32.xlu0 %v1401, 64
  %v1404 = vpop.permute.xlu0 %1403
  %v1406 = vmul.f32 %v1388, %v1404
  %1407 = vmatprep.subr.mxu0 0.0
  %1408 = vmatpush1.msra.mxu0 0.0
  %1409 = vmatprep.subr.mxu0 0.0
  %1410 = vmatpush1.msra.mxu0 0.0
  %1411 = vmatprep.subr.mxu0 0.0
  %1412 = vmatpush1.msra.mxu0 0.0
  %1413 = vmatprep.subr.mxu0 0.0
  %1414 = vmatpush1.msra.mxu0 0.0
  %1415 = vmatprep.subr.mxu0 0.0
  %1416 = vmatpush1.msra.mxu0 0.0
  %1417 = vmatprep.subr.mxu0 0.0
  %1418 = vmatpush1.msra.mxu0 0.0
  %1419 = vmatprep.subr.mxu0 0.0
  %1420 = vmatpush1.msra.mxu0 0.0
  %1421 = vmatprep.subr.mxu0 0.0
  %1422 = vmatpush1.msra.mxu0 0.0
  %1423 = vmatprep.subr.mxu0 0.0
  %1424 = vmatpush1.msra.mxu0 0.0
  %1425 = vmatprep.subr.mxu0 0.0
  %1426 = vmatpush1.msra.mxu0 0.0
  %1427 = vmatprep.subr.mxu0 0.0
  %1428 = vmatpush1.msra.mxu0 0.0
  %1429 = vmatprep.subr.mxu0 0.0
  %1430 = vmatpush1.msra.mxu0 0.0
  %1431 = vmatprep.subr.mxu0 0.0
  %1432 = vmatpush1.msra.mxu0 %v187
  %1433 = vmatprep.subr.mxu0 0.0
  %1434 = vmatpush1.msra.mxu0 %v186
  %1435 = vmatprep.subr.mxu0 0.0
  %1436 = vmatpush1.msra.mxu0 %v185
  %1437 = vmatprep.subr.mxu0 0.0
  %1438 = vmatpush1.msra.mxu0 %v184
  %1439 = vmatprep.subr.mxu0 0.0
  %1440 = vmatpush2.msra.mxu0 0.0
  %1441 = vmatprep.subr.mxu0 0.0
  %1442 = vmatpush2.msra.mxu0 0.0
  %1443 = vmatprep.subr.mxu0 0.0
  %1444 = vmatpush2.msra.mxu0 0.0
  %1445 = vmatprep.subr.mxu0 0.0
  %1446 = vmatpush2.msra.mxu0 0.0
  %1447 = vmatprep.subr.mxu0 0.0
  %1448 = vmatpush2.msra.mxu0 0.0
  %1449 = vmatprep.subr.mxu0 0.0
  %1450 = vmatpush2.msra.mxu0 0.0
  %1451 = vmatprep.subr.mxu0 0.0
  %1452 = vmatpush2.msra.mxu0 0.0
  %1453 = vmatprep.subr.mxu0 0.0
  %1454 = vmatpush2.msra.mxu0 0.0
  %1455 = vmatprep.subr.mxu0 0.0
  %1456 = vmatpush2.msra.mxu0 0.0
  %1457 = vmatprep.subr.mxu0 0.0
  %1458 = vmatpush2.msra.mxu0 0.0
  %1459 = vmatprep.subr.mxu0 0.0
  %1460 = vmatpush2.msra.mxu0 0.0
  %1461 = vmatprep.subr.mxu0 0.0
  %1462 = vmatpush2.msra.mxu0 0.0
  %1463 = vmatprep.subr.mxu0 0.0
  %1464 = vmatpush2.msra.mxu0 0.0
  %1465 = vmatprep.subr.mxu0 0.0
  %1466 = vmatpush2.msra.mxu0 0.0
  %1467 = vmatprep.subr.mxu0 0.0
  %1468 = vmatpush2.msra.mxu0 0.0
  %1469 = vmatprep.subr.mxu0 0.0
  %1470 = vmatpush2.msra.mxu0 0.0
  %1471 = vmatprep.mubr.f32.mxu0 0.0
  %1472 = vmatmul.mubr.f32.gmra.mxu0 %v1235
  %v1473 = vpop.f32.mrf.mxu0
  %v1474 = vadd.f32 0.0, %v1473
  %v1475 = vpop.f32.mrf.mxu0
  %1476 = vdwg.mxu0
  %v1477 = vadd.f32 %v171, %v1474
  %v1478 = vxor.u32 %v1477, 2147483648
  %v1479 = vmul.f32 %v1478, 1.442695
  %v1480 = vpow.pop %v1479
  %v1481 = vadd.f32 %v1480, 1.0
  %v1482 = vrcp.pop %v1481
  %v1483 = vmul.f32 1.0, %v1482
  %v1484 = vtanh.pop %v1477
  %v1485 = vmul.f32 %v1483, %v1225
  %1487 = vrot.lane.b32.xlu0 %v1484, 64
  %v1488 = vpop.permute.xlu0 %1487
  %v1490 = vmul.f32 %v1483, %v1488
  %1492 = vrot.lane.b32.xlu0 %v1490, 32
  %v1493 = vpop.permute.xlu0 %1492
  %v1495 = vadd.f32 %v1485, %v1493
  %v1496 = vtanh.pop %v1495
  %1498 = vrot.lane.b32.xlu0 %v1496, 64
  %v1499 = vpop.permute.xlu0 %1498
  %v1501 = vmul.f32 %v1483, %v1499
  %1503 = vrot.lane.b32.xlu0 %v1501, 32
  %v1504 = vpop.permute.xlu0 %1503
  %v1505 = vsel %vm230, %v1504, 0
  %1507 = vmatprep.subr.mxu0 0.0
  %1508 = vmatpush1.msra.mxu0 0.0
  %1509 = vmatprep.subr.mxu0 0.0
  %1510 = vmatpush1.msra.mxu0 0.0
  %1511 = vmatprep.subr.mxu0 0.0
  %1512 = vmatpush1.msra.mxu0 0.0
  %1513 = vmatprep.subr.mxu0 0.0
  %1514 = vmatpush1.msra.mxu0 0.0
  %1515 = vmatprep.subr.mxu0 0.0
  %1516 = vmatpush1.msra.mxu0 0.0
  %1517 = vmatprep.subr.mxu0 0.0
  %1518 = vmatpush1.msra.mxu0 0.0
  %1519 = vmatprep.subr.mxu0 0.0
  %1520 = vmatpush1.msra.mxu0 0.0
  %1521 = vmatprep.subr.mxu0 0.0
  %1522 = vmatpush1.msra.mxu0 0.0
  %1523 = vmatprep.subr.mxu0 0.0
  %1524 = vmatpush1.msra.mxu0 0.0
  %1525 = vmatprep.subr.mxu0 0.0
  %1526 = vmatpush1.msra.mxu0 0.0
  %1527 = vmatprep.subr.mxu0 0.0
  %1528 = vmatpush1.msra.mxu0 0.0
  %1529 = vmatprep.subr.mxu0 0.0
  %1530 = vmatpush1.msra.mxu0 0.0
  %1531 = vmatprep.subr.mxu0 0.0
  %1532 = vmatpush1.msra.mxu0 %v191
  %1533 = vmatprep.subr.mxu0 0.0
  %1534 = vmatpush1.msra.mxu0 %v190
  %1535 = vmatprep.subr.mxu0 0.0
  %1536 = vmatpush1.msra.mxu0 %v189
  %1537 = vmatprep.subr.mxu0 0.0
  %1538 = vmatpush1.msra.mxu0 %v188
  %1539 = vmatprep.subr.mxu0 0.0
  %1540 = vmatpush2.msra.mxu0 0.0
  %1541 = vmatprep.subr.mxu0 0.0
  %1542 = vmatpush2.msra.mxu0 0.0
  %1543 = vmatprep.subr.mxu0 0.0
  %1544 = vmatpush2.msra.mxu0 0.0
  %1545 = vmatprep.subr.mxu0 0.0
  %1546 = vmatpush2.msra.mxu0 0.0
  %1547 = vmatprep.subr.mxu0 0.0
  %1548 = vmatpush2.msra.mxu0 0.0
  %1549 = vmatprep.subr.mxu0 0.0
  %1550 = vmatpush2.msra.mxu0 0.0
  %1551 = vmatprep.subr.mxu0 0.0
  %1552 = vmatpush2.msra.mxu0 0.0
  %1553 = vmatprep.subr.mxu0 0.0
  %1554 = vmatpush2.msra.mxu0 0.0
  %1555 = vmatprep.subr.mxu0 0.0
  %1556 = vmatpush2.msra.mxu0 0.0
  %1557 = vmatprep.subr.mxu0 0.0
  %1558 = vmatpush2.msra.mxu0 0.0
  %1559 = vmatprep.subr.mxu0 0.0
  %1560 = vmatpush2.msra.mxu0 0.0
  %1561 = vmatprep.subr.mxu0 0.0
  %1562 = vmatpush2.msra.mxu0 0.0
  %1563 = vmatprep.subr.mxu0 0.0
  %1564 = vmatpush2.msra.mxu0 0.0
  %1565 = vmatprep.subr.mxu0 0.0
  %1566 = vmatpush2.msra.mxu0 0.0
  %1567 = vmatprep.subr.mxu0 0.0
  %1568 = vmatpush2.msra.mxu0 0.0
  %1569 = vmatprep.subr.mxu0 0.0
  %1570 = vmatpush2.msra.mxu0 0.0
  %1571 = vmatprep.mubr.f32.mxu0 0.0
  %1572 = vmatmul.mubr.f32.gmra.mxu0 %v1505
  %v1573 = vpop.f32.mrf.mxu0
  %v1574 = vadd.f32 %v225, %v1573
  %v1575 = vpop.f32.mrf.mxu0
  %1576 = vdwg.mxu0
  %1578 = vrot.lane.b32.xlu0 %v1406, 32
  %v1579 = vpop.permute.xlu0 %1578
  %v1580 = vsel %vm230, %v1579, 0
  %1582 = vmatprep.subr.mxu0 0.0
  %1583 = vmatpush1.msra.mxu0 0.0
  %1584 = vmatprep.subr.mxu0 0.0
  %1585 = vmatpush1.msra.mxu0 0.0
  %1586 = vmatprep.subr.mxu0 0.0
  %1587 = vmatpush1.msra.mxu0 0.0
  %1588 = vmatprep.subr.mxu0 0.0
  %1589 = vmatpush1.msra.mxu0 0.0
  %1590 = vmatprep.subr.mxu0 0.0
  %1591 = vmatpush1.msra.mxu0 0.0
  %1592 = vmatprep.subr.mxu0 0.0
  %1593 = vmatpush1.msra.mxu0 0.0
  %1594 = vmatprep.subr.mxu0 0.0
  %1595 = vmatpush1.msra.mxu0 0.0
  %1596 = vmatprep.subr.mxu0 0.0
  %1597 = vmatpush1.msra.mxu0 0.0
  %1598 = vmatprep.subr.mxu0 0.0
  %1599 = vmatpush1.msra.mxu0 0.0
  %1600 = vmatprep.subr.mxu0 0.0
  %1601 = vmatpush1.msra.mxu0 0.0
  %1602 = vmatprep.subr.mxu0 0.0
  %1603 = vmatpush1.msra.mxu0 0.0
  %1604 = vmatprep.subr.mxu0 0.0
  %1605 = vmatpush1.msra.mxu0 0.0
  %1606 = vmatprep.subr.mxu0 0.0
  %1607 = vmatpush1.msra.mxu0 %v195
  %1608 = vmatprep.subr.mxu0 0.0
  %1609 = vmatpush1.msra.mxu0 %v194
  %1610 = vmatprep.subr.mxu0 0.0
  %1611 = vmatpush1.msra.mxu0 %v193
  %1612 = vmatprep.subr.mxu0 0.0
  %1613 = vmatpush1.msra.mxu0 %v192
  %1614 = vmatprep.subr.mxu0 0.0
  %1615 = vmatpush2.msra.mxu0 0.0
  %1616 = vmatprep.subr.mxu0 0.0
  %1617 = vmatpush2.msra.mxu0 0.0
  %1618 = vmatprep.subr.mxu0 0.0
  %1619 = vmatpush2.msra.mxu0 0.0
  %1620 = vmatprep.subr.mxu0 0.0
  %1621 = vmatpush2.msra.mxu0 0.0
  %1622 = vmatprep.subr.mxu0 0.0
  %1623 = vmatpush2.msra.mxu0 0.0
  %1624 = vmatprep.subr.mxu0 0.0
  %1625 = vmatpush2.msra.mxu0 0.0
  %1626 = vmatprep.subr.mxu0 0.0
  %1627 = vmatpush2.msra.mxu0 0.0
  %1628 = vmatprep.subr.mxu0 0.0
  %1629 = vmatpush2.msra.mxu0 0.0
  %1630 = vmatprep.subr.mxu0 0.0
  %1631 = vmatpush2.msra.mxu0 0.0
  %1632 = vmatprep.subr.mxu0 0.0
  %1633 = vmatpush2.msra.mxu0 0.0
  %1634 = vmatprep.subr.mxu0 0.0
  %1635 = vmatpush2.msra.mxu0 0.0
  %1636 = vmatprep.subr.mxu0 0.0
  %1637 = vmatpush2.msra.mxu0 0.0
  %1638 = vmatprep.subr.mxu0 0.0
  %1639 = vmatpush2.msra.mxu0 0.0
  %1640 = vmatprep.subr.mxu0 0.0
  %1641 = vmatpush2.msra.mxu0 0.0
  %1642 = vmatprep.subr.mxu0 0.0
  %1643 = vmatpush2.msra.mxu0 0.0
  %1644 = vmatprep.subr.mxu0 0.0
  %1645 = vmatpush2.msra.mxu0 0.0
  %1646 = vmatprep.mubr.f32.mxu0 0.0
  %1647 = vmatmul.mubr.f32.gmra.mxu0 %v1580
  %v1648 = vpop.f32.mrf.mxu0
  %v1649 = vadd.f32 0.0, %v1648
  %v1650 = vpop.f32.mrf.mxu0
  %1651 = vdwg.mxu0
  %v1652 = vadd.f32 %v1574, %v1649
  %v1653 = vxor.u32 %v1652, 2147483648
  %v1654 = vmul.f32 %v1653, 1.442695
  %v1655 = vpow.pop %v1654
  %v1656 = vadd.f32 %v1655, 1.0
  %v1657 = vrcp.pop %v1656
  %v1658 = vmul.f32 1.0, %v1657
  %v1659 = vtanh.pop %v1652
  %v1660 = vmul.f32 %v1658, %v1400
  %1662 = vrot.lane.b32.xlu0 %v1659, 64
  %v1663 = vpop.permute.xlu0 %1662
  %v1665 = vmul.f32 %v1658, %v1663
  %1667 = vrot.lane.b32.xlu0 %v1665, 32
  %v1668 = vpop.permute.xlu0 %1667
  %v1670 = vadd.f32 %v1660, %v1668
  %v1671 = vtanh.pop %v1670
  %1673 = vrot.lane.b32.xlu0 %v1671, 64
  %v1674 = vpop.permute.xlu0 %1673
  %v1676 = vmul.f32 %v1658, %v1674
  %1677 = vmatprep.subr.mxu0 0.0
  %1678 = vmatpush1.msra.mxu0 0.0
  %1679 = vmatprep.subr.mxu0 0.0
  %1680 = vmatpush1.msra.mxu0 0.0
  %1681 = vmatprep.subr.mxu0 0.0
  %1682 = vmatpush1.msra.mxu0 0.0
  %1683 = vmatprep.subr.mxu0 0.0
  %1684 = vmatpush1.msra.mxu0 0.0
  %1685 = vmatprep.subr.mxu0 0.0
  %1686 = vmatpush1.msra.mxu0 0.0
  %1687 = vmatprep.subr.mxu0 0.0
  %1688 = vmatpush1.msra.mxu0 0.0
  %1689 = vmatprep.subr.mxu0 0.0
  %1690 = vmatpush1.msra.mxu0 0.0
  %1691 = vmatprep.subr.mxu0 0.0
  %1692 = vmatpush1.msra.mxu0 0.0
  %1693 = vmatprep.subr.mxu0 0.0
  %1694 = vmatpush1.msra.mxu0 0.0
  %1695 = vmatprep.subr.mxu0 0.0
  %1696 = vmatpush1.msra.mxu0 0.0
  %1697 = vmatprep.subr.mxu0 0.0
  %1698 = vmatpush1.msra.mxu0 0.0
  %1699 = vmatprep.subr.mxu0 0.0
  %1700 = vmatpush1.msra.mxu0 0.0
  %1701 = vmatprep.subr.mxu0 0.0
  %1702 = vmatpush1.msra.mxu0 %v187
  %1703 = vmatprep.subr.mxu0 0.0
  %1704 = vmatpush1.msra.mxu0 %v186
  %1705 = vmatprep.subr.mxu0 0.0
  %1706 = vmatpush1.msra.mxu0 %v185
  %1707 = vmatprep.subr.mxu0 0.0
  %1708 = vmatpush1.msra.mxu0 %v184
  %1709 = vmatprep.subr.mxu0 0.0
  %1710 = vmatpush2.msra.mxu0 0.0
  %1711 = vmatprep.subr.mxu0 0.0
  %1712 = vmatpush2.msra.mxu0 0.0
  %1713 = vmatprep.subr.mxu0 0.0
  %1714 = vmatpush2.msra.mxu0 0.0
  %1715 = vmatprep.subr.mxu0 0.0
  %1716 = vmatpush2.msra.mxu0 0.0
  %1717 = vmatprep.subr.mxu0 0.0
  %1718 = vmatpush2.msra.mxu0 0.0
  %1719 = vmatprep.subr.mxu0 0.0
  %1720 = vmatpush2.msra.mxu0 0.0
  %1721 = vmatprep.subr.mxu0 0.0
  %1722 = vmatpush2.msra.mxu0 0.0
  %1723 = vmatprep.subr.mxu0 0.0
  %1724 = vmatpush2.msra.mxu0 0.0
  %1725 = vmatprep.subr.mxu0 0.0
  %1726 = vmatpush2.msra.mxu0 0.0
  %1727 = vmatprep.subr.mxu0 0.0
  %1728 = vmatpush2.msra.mxu0 0.0
  %1729 = vmatprep.subr.mxu0 0.0
  %1730 = vmatpush2.msra.mxu0 0.0
  %1731 = vmatprep.subr.mxu0 0.0
  %1732 = vmatpush2.msra.mxu0 0.0
  %1733 = vmatprep.subr.mxu0 0.0
  %1734 = vmatpush2.msra.mxu0 0.0
  %1735 = vmatprep.subr.mxu0 0.0
  %1736 = vmatpush2.msra.mxu0 0.0
  %1737 = vmatprep.subr.mxu0 0.0
  %1738 = vmatpush2.msra.mxu0 0.0
  %1739 = vmatprep.subr.mxu0 0.0
  %1740 = vmatpush2.msra.mxu0 0.0
  %1741 = vmatprep.mubr.f32.mxu0 0.0
  %1742 = vmatmul.mubr.f32.gmra.mxu0 %v1505
  %v1743 = vpop.f32.mrf.mxu0
  %v1744 = vadd.f32 0.0, %v1743
  %v1745 = vpop.f32.mrf.mxu0
  %1746 = vdwg.mxu0
  %v1747 = vadd.f32 %v176, %v1744
  %v1748 = vxor.u32 %v1747, 2147483648
  %v1749 = vmul.f32 %v1748, 1.442695
  %v1750 = vpow.pop %v1749
  %v1751 = vadd.f32 %v1750, 1.0
  %v1752 = vrcp.pop %v1751
  %v1753 = vmul.f32 1.0, %v1752
  %v1754 = vtanh.pop %v1747
  %v1755 = vmul.f32 %v1753, %v1495
  %1757 = vrot.lane.b32.xlu0 %v1754, 64
  %v1758 = vpop.permute.xlu0 %1757
  %v1760 = vmul.f32 %v1753, %v1758
  %1762 = vrot.lane.b32.xlu0 %v1760, 32
  %v1763 = vpop.permute.xlu0 %1762
  %v1765 = vadd.f32 %v1755, %v1763
  %v1766 = vtanh.pop %v1765
  %1768 = vrot.lane.b32.xlu0 %v1766, 64
  %v1769 = vpop.permute.xlu0 %1768
  %v1771 = vmul.f32 %v1753, %v1769
  %1773 = vrot.lane.b32.xlu0 %v1771, 32
  %v1774 = vpop.permute.xlu0 %1773
  %v1775 = vsel %vm230, %v1774, 0
  %1777 = vmatprep.subr.mxu0 0.0
  %1778 = vmatpush1.msra.mxu0 0.0
  %1779 = vmatprep.subr.mxu0 0.0
  %1780 = vmatpush1.msra.mxu0 0.0
  %1781 = vmatprep.subr.mxu0 0.0
  %1782 = vmatpush1.msra.mxu0 0.0
  %1783 = vmatprep.subr.mxu0 0.0
  %1784 = vmatpush1.msra.mxu0 0.0
  %1785 = vmatprep.subr.mxu0 0.0
  %1786 = vmatpush1.msra.mxu0 0.0
  %1787 = vmatprep.subr.mxu0 0.0
  %1788 = vmatpush1.msra.mxu0 0.0
  %1789 = vmatprep.subr.mxu0 0.0
  %1790 = vmatpush1.msra.mxu0 0.0
  %1791 = vmatprep.subr.mxu0 0.0
  %1792 = vmatpush1.msra.mxu0 0.0
  %1793 = vmatprep.subr.mxu0 0.0
  %1794 = vmatpush1.msra.mxu0 0.0
  %1795 = vmatprep.subr.mxu0 0.0
  %1796 = vmatpush1.msra.mxu0 0.0
  %1797 = vmatprep.subr.mxu0 0.0
  %1798 = vmatpush1.msra.mxu0 0.0
  %1799 = vmatprep.subr.mxu0 0.0
  %1800 = vmatpush1.msra.mxu0 0.0
  %1801 = vmatprep.subr.mxu0 0.0
  %1802 = vmatpush1.msra.mxu0 %v191
  %1803 = vmatprep.subr.mxu0 0.0
  %1804 = vmatpush1.msra.mxu0 %v190
  %1805 = vmatprep.subr.mxu0 0.0
  %1806 = vmatpush1.msra.mxu0 %v189
  %1807 = vmatprep.subr.mxu0 0.0
  %1808 = vmatpush1.msra.mxu0 %v188
  %1809 = vmatprep.subr.mxu0 0.0
  %1810 = vmatpush2.msra.mxu0 0.0
  %1811 = vmatprep.subr.mxu0 0.0
  %1812 = vmatpush2.msra.mxu0 0.0
  %1813 = vmatprep.subr.mxu0 0.0
  %1814 = vmatpush2.msra.mxu0 0.0
  %1815 = vmatprep.subr.mxu0 0.0
  %1816 = vmatpush2.msra.mxu0 0.0
  %1817 = vmatprep.subr.mxu0 0.0
  %1818 = vmatpush2.msra.mxu0 0.0
  %1819 = vmatprep.subr.mxu0 0.0
  %1820 = vmatpush2.msra.mxu0 0.0
  %1821 = vmatprep.subr.mxu0 0.0
  %1822 = vmatpush2.msra.mxu0 0.0
  %1823 = vmatprep.subr.mxu0 0.0
  %1824 = vmatpush2.msra.mxu0 0.0
  %1825 = vmatprep.subr.mxu0 0.0
  %1826 = vmatpush2.msra.mxu0 0.0
  %1827 = vmatprep.subr.mxu0 0.0
  %1828 = vmatpush2.msra.mxu0 0.0
  %1829 = vmatprep.subr.mxu0 0.0
  %1830 = vmatpush2.msra.mxu0 0.0
  %1831 = vmatprep.subr.mxu0 0.0
  %1832 = vmatpush2.msra.mxu0 0.0
  %1833 = vmatprep.subr.mxu0 0.0
  %1834 = vmatpush2.msra.mxu0 0.0
  %1835 = vmatprep.subr.mxu0 0.0
  %1836 = vmatpush2.msra.mxu0 0.0
  %1837 = vmatprep.subr.mxu0 0.0
  %1838 = vmatpush2.msra.mxu0 0.0
  %1839 = vmatprep.subr.mxu0 0.0
  %1840 = vmatpush2.msra.mxu0 0.0
  %1841 = vmatprep.mubr.f32.mxu0 0.0
  %1842 = vmatmul.mubr.f32.gmra.mxu0 %v1775
  %v1843 = vpop.f32.mrf.mxu0
  %v1844 = vadd.f32 %v225, %v1843
  %v1845 = vpop.f32.mrf.mxu0
  %1846 = vdwg.mxu0
  %1848 = vrot.lane.b32.xlu0 %v1676, 32
  %v1849 = vpop.permute.xlu0 %1848
  %v1850 = vsel %vm230, %v1849, 0
  %1852 = vmatprep.subr.mxu0 0.0
  %1853 = vmatpush1.msra.mxu0 0.0
  %1854 = vmatprep.subr.mxu0 0.0
  %1855 = vmatpush1.msra.mxu0 0.0
  %1856 = vmatprep.subr.mxu0 0.0
  %1857 = vmatpush1.msra.mxu0 0.0
  %1858 = vmatprep.subr.mxu0 0.0
  %1859 = vmatpush1.msra.mxu0 0.0
  %1860 = vmatprep.subr.mxu0 0.0
  %1861 = vmatpush1.msra.mxu0 0.0
  %1862 = vmatprep.subr.mxu0 0.0
  %1863 = vmatpush1.msra.mxu0 0.0
  %1864 = vmatprep.subr.mxu0 0.0
  %1865 = vmatpush1.msra.mxu0 0.0
  %1866 = vmatprep.subr.mxu0 0.0
  %1867 = vmatpush1.msra.mxu0 0.0
  %1868 = vmatprep.subr.mxu0 0.0
  %1869 = vmatpush1.msra.mxu0 0.0
  %1870 = vmatprep.subr.mxu0 0.0
  %1871 = vmatpush1.msra.mxu0 0.0
  %1872 = vmatprep.subr.mxu0 0.0
  %1873 = vmatpush1.msra.mxu0 0.0
  %1874 = vmatprep.subr.mxu0 0.0
  %1875 = vmatpush1.msra.mxu0 0.0
  %1876 = vmatprep.subr.mxu0 0.0
  %1877 = vmatpush1.msra.mxu0 %v195
  %1878 = vmatprep.subr.mxu0 0.0
  %1879 = vmatpush1.msra.mxu0 %v194
  %1880 = vmatprep.subr.mxu0 0.0
  %1881 = vmatpush1.msra.mxu0 %v193
  %1882 = vmatprep.subr.mxu0 0.0
  %1883 = vmatpush1.msra.mxu0 %v192
  %1884 = vmatprep.subr.mxu0 0.0
  %1885 = vmatpush2.msra.mxu0 0.0
  %1886 = vmatprep.subr.mxu0 0.0
  %1887 = vmatpush2.msra.mxu0 0.0
  %1888 = vmatprep.subr.mxu0 0.0
  %1889 = vmatpush2.msra.mxu0 0.0
  %1890 = vmatprep.subr.mxu0 0.0
  %1891 = vmatpush2.msra.mxu0 0.0
  %1892 = vmatprep.subr.mxu0 0.0
  %1893 = vmatpush2.msra.mxu0 0.0
  %1894 = vmatprep.subr.mxu0 0.0
  %1895 = vmatpush2.msra.mxu0 0.0
  %1896 = vmatprep.subr.mxu0 0.0
  %1897 = vmatpush2.msra.mxu0 0.0
  %1898 = vmatprep.subr.mxu0 0.0
  %1899 = vmatpush2.msra.mxu0 0.0
  %1900 = vmatprep.subr.mxu0 0.0
  %1901 = vmatpush2.msra.mxu0 0.0
  %1902 = vmatprep.subr.mxu0 0.0
  %1903 = vmatpush2.msra.mxu0 0.0
  %1904 = vmatprep.subr.mxu0 0.0
  %1905 = vmatpush2.msra.mxu0 0.0
  %1906 = vmatprep.subr.mxu0 0.0
  %1907 = vmatpush2.msra.mxu0 0.0
  %1908 = vmatprep.subr.mxu0 0.0
  %1909 = vmatpush2.msra.mxu0 0.0
  %1910 = vmatprep.subr.mxu0 0.0
  %1911 = vmatpush2.msra.mxu0 0.0
  %1912 = vmatprep.subr.mxu0 0.0
  %1913 = vmatpush2.msra.mxu0 0.0
  %1914 = vmatprep.subr.mxu0 0.0
  %1915 = vmatpush2.msra.mxu0 0.0
  %1916 = vmatprep.mubr.f32.mxu0 0.0
  %1917 = vmatmul.mubr.f32.gmra.mxu0 %v1850
  %v1918 = vpop.f32.mrf.mxu0
  %v1919 = vadd.f32 0.0, %v1918
  %v1920 = vpop.f32.mrf.mxu0
  %1921 = vdwg.mxu0
  %v1922 = vadd.f32 %v1844, %v1919
  %v1923 = vxor.u32 %v1922, 2147483648
  %v1924 = vmul.f32 %v1923, 1.442695
  %v1925 = vpow.pop %v1924
  %v1926 = vadd.f32 %v1925, 1.0
  %v1927 = vrcp.pop %v1926
  %v1928 = vmul.f32 1.0, %v1927
  %v1929 = vtanh.pop %v1922
  %v1930 = vmul.f32 %v1928, %v1670
  %1932 = vrot.lane.b32.xlu0 %v1929, 64
  %v1933 = vpop.permute.xlu0 %1932
  %v1935 = vmul.f32 %v1928, %v1933
  %1937 = vrot.lane.b32.xlu0 %v1935, 32
  %v1938 = vpop.permute.xlu0 %1937
  %v1940 = vadd.f32 %v1930, %v1938
  %v1941 = vtanh.pop %v1940
  %1943 = vrot.lane.b32.xlu0 %v1941, 64
  %v1944 = vpop.permute.xlu0 %1943
  %v1946 = vmul.f32 %v1928, %v1944
  %1947 = vmatprep.subr.mxu0 0.0
  %1948 = vmatpush1.msra.mxu0 0.0
  %1949 = vmatprep.subr.mxu0 0.0
  %1950 = vmatpush1.msra.mxu0 0.0
  %1951 = vmatprep.subr.mxu0 0.0
  %1952 = vmatpush1.msra.mxu0 0.0
  %1953 = vmatprep.subr.mxu0 0.0
  %1954 = vmatpush1.msra.mxu0 0.0
  %1955 = vmatprep.subr.mxu0 0.0
  %1956 = vmatpush1.msra.mxu0 0.0
  %1957 = vmatprep.subr.mxu0 0.0
  %1958 = vmatpush1.msra.mxu0 0.0
  %1959 = vmatprep.subr.mxu0 0.0
  %1960 = vmatpush1.msra.mxu0 0.0
  %1961 = vmatprep.subr.mxu0 0.0
  %1962 = vmatpush1.msra.mxu0 0.0
  %1963 = vmatprep.subr.mxu0 0.0
  %1964 = vmatpush1.msra.mxu0 0.0
  %1965 = vmatprep.subr.mxu0 0.0
  %1966 = vmatpush1.msra.mxu0 0.0
  %1967 = vmatprep.subr.mxu0 0.0
  %1968 = vmatpush1.msra.mxu0 0.0
  %1969 = vmatprep.subr.mxu0 0.0
  %1970 = vmatpush1.msra.mxu0 0.0
  %1971 = vmatprep.subr.mxu0 0.0
  %1972 = vmatpush1.msra.mxu0 %v187
  %1973 = vmatprep.subr.mxu0 0.0
  %1974 = vmatpush1.msra.mxu0 %v186
  %1975 = vmatprep.subr.mxu0 0.0
  %1976 = vmatpush1.msra.mxu0 %v185
  %1977 = vmatprep.subr.mxu0 0.0
  %1978 = vmatpush1.msra.mxu0 %v184
  %1979 = vmatprep.subr.mxu0 0.0
  %1980 = vmatpush2.msra.mxu0 0.0
  %1981 = vmatprep.subr.mxu0 0.0
  %1982 = vmatpush2.msra.mxu0 0.0
  %1983 = vmatprep.subr.mxu0 0.0
  %1984 = vmatpush2.msra.mxu0 0.0
  %1985 = vmatprep.subr.mxu0 0.0
  %1986 = vmatpush2.msra.mxu0 0.0
  %1987 = vmatprep.subr.mxu0 0.0
  %1988 = vmatpush2.msra.mxu0 0.0
  %1989 = vmatprep.subr.mxu0 0.0
  %1990 = vmatpush2.msra.mxu0 0.0
  %1991 = vmatprep.subr.mxu0 0.0
  %1992 = vmatpush2.msra.mxu0 0.0
  %1993 = vmatprep.subr.mxu0 0.0
  %1994 = vmatpush2.msra.mxu0 0.0
  %1995 = vmatprep.subr.mxu0 0.0
  %1996 = vmatpush2.msra.mxu0 0.0
  %1997 = vmatprep.subr.mxu0 0.0
  %1998 = vmatpush2.msra.mxu0 0.0
  %1999 = vmatprep.subr.mxu0 0.0
  %2000 = vmatpush2.msra.mxu0 0.0
  %2001 = vmatprep.subr.mxu0 0.0
  %2002 = vmatpush2.msra.mxu0 0.0
  %2003 = vmatprep.subr.mxu0 0.0
  %2004 = vmatpush2.msra.mxu0 0.0
  %2005 = vmatprep.subr.mxu0 0.0
  %2006 = vmatpush2.msra.mxu0 0.0
  %2007 = vmatprep.subr.mxu0 0.0
  %2008 = vmatpush2.msra.mxu0 0.0
  %2009 = vmatprep.subr.mxu0 0.0
  %2010 = vmatpush2.msra.mxu0 0.0
  %2011 = vmatprep.mubr.f32.mxu0 0.0
  %2012 = vmatmul.mubr.f32.gmra.mxu0 %v1775
  %v2013 = vpop.f32.mrf.mxu0
  %v2014 = vadd.f32 0.0, %v2013
  %v2015 = vpop.f32.mrf.mxu0
  %2016 = vdwg.mxu0
  %v2017 = vadd.f32 %v181, %v2014
  %v2018 = vxor.u32 %v2017, 2147483648
  %v2019 = vmul.f32 %v2018, 1.442695
  %v2020 = vpow.pop %v2019
  %v2021 = vadd.f32 %v2020, 1.0
  %v2022 = vrcp.pop %v2021
  %v2023 = vmul.f32 1.0, %v2022
  %v2024 = vtanh.pop %v2017
  %v2025 = vmul.f32 %v2023, %v1765
  %2027 = vrot.lane.b32.xlu0 %v2024, 64
  %v2028 = vpop.permute.xlu0 %2027
  %v2030 = vmul.f32 %v2023, %v2028
  %2032 = vrot.lane.b32.xlu0 %v2030, 32
  %v2033 = vpop.permute.xlu0 %2032
  %v2035 = vadd.f32 %v2025, %v2033
  %v2036 = vtanh.pop %v2035
  %2038 = vrot.lane.b32.xlu0 %v2036, 64
  %v2039 = vpop.permute.xlu0 %2038
  %v2041 = vmul.f32 %v2023, %v2039
  %2043 = vrot.lane.b32.xlu0 %v2041, 32
  %v2044 = vpop.permute.xlu0 %2043
  %v2045 = vsel %vm230, %v2044, 0
  %2047 = vmatprep.subr.mxu0 0.0
  %2048 = vmatpush1.msra.mxu0 0.0
  %2049 = vmatprep.subr.mxu0 0.0
  %2050 = vmatpush1.msra.mxu0 0.0
  %2051 = vmatprep.subr.mxu0 0.0
  %2052 = vmatpush1.msra.mxu0 0.0
  %2053 = vmatprep.subr.mxu0 0.0
  %2054 = vmatpush1.msra.mxu0 0.0
  %2055 = vmatprep.subr.mxu0 0.0
  %2056 = vmatpush1.msra.mxu0 0.0
  %2057 = vmatprep.subr.mxu0 0.0
  %2058 = vmatpush1.msra.mxu0 0.0
  %2059 = vmatprep.subr.mxu0 0.0
  %2060 = vmatpush1.msra.mxu0 0.0
  %2061 = vmatprep.subr.mxu0 0.0
  %2062 = vmatpush1.msra.mxu0 0.0
  %2063 = vmatprep.subr.mxu0 0.0
  %2064 = vmatpush1.msra.mxu0 0.0
  %2065 = vmatprep.subr.mxu0 0.0
  %2066 = vmatpush1.msra.mxu0 0.0
  %2067 = vmatprep.subr.mxu0 0.0
  %2068 = vmatpush1.msra.mxu0 0.0
  %2069 = vmatprep.subr.mxu0 0.0
  %2070 = vmatpush1.msra.mxu0 0.0
  %2071 = vmatprep.subr.mxu0 0.0
  %2072 = vmatpush1.msra.mxu0 %v191
  %2073 = vmatprep.subr.mxu0 0.0
  %2074 = vmatpush1.msra.mxu0 %v190
  %2075 = vmatprep.subr.mxu0 0.0
  %2076 = vmatpush1.msra.mxu0 %v189
  %2077 = vmatprep.subr.mxu0 0.0
  %2078 = vmatpush1.msra.mxu0 %v188
  %2079 = vmatprep.subr.mxu0 0.0
  %2080 = vmatpush2.msra.mxu0 0.0
  %2081 = vmatprep.subr.mxu0 0.0
  %2082 = vmatpush2.msra.mxu0 0.0
  %2083 = vmatprep.subr.mxu0 0.0
  %2084 = vmatpush2.msra.mxu0 0.0
  %2085 = vmatprep.subr.mxu0 0.0
  %2086 = vmatpush2.msra.mxu0 0.0
  %2087 = vmatprep.subr.mxu0 0.0
  %2088 = vmatpush2.msra.mxu0 0.0
  %2089 = vmatprep.subr.mxu0 0.0
  %2090 = vmatpush2.msra.mxu0 0.0
  %2091 = vmatprep.subr.mxu0 0.0
  %2092 = vmatpush2.msra.mxu0 0.0
  %2093 = vmatprep.subr.mxu0 0.0
  %2094 = vmatpush2.msra.mxu0 0.0
  %2095 = vmatprep.subr.mxu0 0.0
  %2096 = vmatpush2.msra.mxu0 0.0
  %2097 = vmatprep.subr.mxu0 0.0
  %2098 = vmatpush2.msra.mxu0 0.0
  %2099 = vmatprep.subr.mxu0 0.0
  %2100 = vmatpush2.msra.mxu0 0.0
  %2101 = vmatprep.subr.mxu0 0.0
  %2102 = vmatpush2.msra.mxu0 0.0
  %2103 = vmatprep.subr.mxu0 0.0
  %2104 = vmatpush2.msra.mxu0 0.0
  %2105 = vmatprep.subr.mxu0 0.0
  %2106 = vmatpush2.msra.mxu0 0.0
  %2107 = vmatprep.subr.mxu0 0.0
  %2108 = vmatpush2.msra.mxu0 0.0
  %2109 = vmatprep.subr.mxu0 0.0
  %2110 = vmatpush2.msra.mxu0 0.0
  %2111 = vmatprep.mubr.f32.mxu0 0.0
  %2112 = vmatmul.mubr.f32.gmra.mxu0 %v2045
  %v2113 = vpop.f32.mrf.mxu0
  %v2114 = vadd.f32 %v225, %v2113
  %v2115 = vpop.f32.mrf.mxu0
  %2116 = vdwg.mxu0
  %2118 = vrot.lane.b32.xlu0 %v1946, 32
  %v2119 = vpop.permute.xlu0 %2118
  %v2120 = vsel %vm230, %v2119, 0
  %2122 = vmatprep.subr.mxu0 0.0
  %2123 = vmatpush1.msra.mxu0 0.0
  %2124 = vmatprep.subr.mxu0 0.0
  %2125 = vmatpush1.msra.mxu0 0.0
  %2126 = vmatprep.subr.mxu0 0.0
  %2127 = vmatpush1.msra.mxu0 0.0
  %2128 = vmatprep.subr.mxu0 0.0
  %2129 = vmatpush1.msra.mxu0 0.0
  %2130 = vmatprep.subr.mxu0 0.0
  %2131 = vmatpush1.msra.mxu0 0.0
  %2132 = vmatprep.subr.mxu0 0.0
  %2133 = vmatpush1.msra.mxu0 0.0
  %2134 = vmatprep.subr.mxu0 0.0
  %2135 = vmatpush1.msra.mxu0 0.0
  %2136 = vmatprep.subr.mxu0 0.0
  %2137 = vmatpush1.msra.mxu0 0.0
  %2138 = vmatprep.subr.mxu0 0.0
  %2139 = vmatpush1.msra.mxu0 0.0
  %2140 = vmatprep.subr.mxu0 0.0
  %2141 = vmatpush1.msra.mxu0 0.0
  %2142 = vmatprep.subr.mxu0 0.0
  %2143 = vmatpush1.msra.mxu0 0.0
  %2144 = vmatprep.subr.mxu0 0.0
  %2145 = vmatpush1.msra.mxu0 0.0
  %2146 = vmatprep.subr.mxu0 0.0
  %2147 = vmatpush1.msra.mxu0 %v195
  %2148 = vmatprep.subr.mxu0 0.0
  %2149 = vmatpush1.msra.mxu0 %v194
  %2150 = vmatprep.subr.mxu0 0.0
  %2151 = vmatpush1.msra.mxu0 %v193
  %2152 = vmatprep.subr.mxu0 0.0
  %2153 = vmatpush1.msra.mxu0 %v192
  %2154 = vmatprep.subr.mxu0 0.0
  %2155 = vmatpush2.msra.mxu0 0.0
  %2156 = vmatprep.subr.mxu0 0.0
  %2157 = vmatpush2.msra.mxu0 0.0
  %2158 = vmatprep.subr.mxu0 0.0
  %2159 = vmatpush2.msra.mxu0 0.0
  %2160 = vmatprep.subr.mxu0 0.0
  %2161 = vmatpush2.msra.mxu0 0.0
  %2162 = vmatprep.subr.mxu0 0.0
  %2163 = vmatpush2.msra.mxu0 0.0
  %2164 = vmatprep.subr.mxu0 0.0
  %2165 = vmatpush2.msra.mxu0 0.0
  %2166 = vmatprep.subr.mxu0 0.0
  %2167 = vmatpush2.msra.mxu0 0.0
  %2168 = vmatprep.subr.mxu0 0.0
  %2169 = vmatpush2.msra.mxu0 0.0
  %2170 = vmatprep.subr.mxu0 0.0
  %2171 = vmatpush2.msra.mxu0 0.0
  %2172 = vmatprep.subr.mxu0 0.0
  %2173 = vmatpush2.msra.mxu0 0.0
  %2174 = vmatprep.subr.mxu0 0.0
  %2175 = vmatpush2.msra.mxu0 0.0
  %2176 = vmatprep.subr.mxu0 0.0
  %2177 = vmatpush2.msra.mxu0 0.0
  %2178 = vmatprep.subr.mxu0 0.0
  %2179 = vmatpush2.msra.mxu0 0.0
  %2180 = vmatprep.subr.mxu0 0.0
  %2181 = vmatpush2.msra.mxu0 0.0
  %2182 = vmatprep.subr.mxu0 0.0
  %2183 = vmatpush2.msra.mxu0 0.0
  %2184 = vmatprep.subr.mxu0 0.0
  %2185 = vmatpush2.msra.mxu0 0.0
  %2186 = vmatprep.mubr.f32.mxu0 0.0
  %2187 = vmatmul.mubr.f32.gmra.mxu0 %v2120
  %v2188 = vpop.f32.mrf.mxu0
  %v2189 = vadd.f32 0.0, %v2188
  %v2190 = vpop.f32.mrf.mxu0
  %2191 = vdwg.mxu0
  %v2192 = vadd.f32 %v2114, %v2189
  %v2193 = vxor.u32 %v2192, 2147483648
  %v2194 = vmul.f32 %v2193, 1.442695
  %v2195 = vpow.pop %v2194
  %v2196 = vadd.f32 %v2195, 1.0
  %v2197 = vrcp.pop %v2196
  %v2198 = vmul.f32 1.0, %v2197
  %v2199 = vtanh.pop %v2192
  %v2200 = vmul.f32 %v2198, %v1940
  %2202 = vrot.lane.b32.xlu0 %v2199, 64
  %v2203 = vpop.permute.xlu0 %2202
  %v2205 = vmul.f32 %v2198, %v2203
  %2207 = vrot.lane.b32.xlu0 %v2205, 32
  %v2208 = vpop.permute.xlu0 %2207
  %v2210 = vadd.f32 %v2200, %v2208
  %v2211 = vtanh.pop %v2210
  %2213 = vrot.lane.b32.xlu0 %v2211, 64
  %v2214 = vpop.permute.xlu0 %2213
  %v2216 = vmul.f32 %v2198, %v2214
  %v2217 = vld [vmem:[%s7] sm:$0x1]
  %v2219 = vlaneseq
  %v2220 = vshrl.u32 %v2219, 7
  %v2221 = vsub.s32 0, %v2220
  %v2222 = vrot.slane %v2217, %v2221
  %2223 = vrot.lane.b32.xlu0 %v2222, 96
  %v2224 = vpop.permute.xlu0 %2223
  %v2226 = vmul.f32 %v2216, %v2224
  %2228 = vrot.lane.b32.xlu0 %v2226, 32
  %v2229 = vpop.permute.xlu0 %2228
  %v2231 = vsel %vm230, %v2229, 0.0
  %2232 = vadd.xlane.f32.xlu0 %v2231
  %v2233 = vpop.xlane.xlu0 %2232
  %v2234 = vld [vmem:[#allocation2] sm:$0x1]
  %v2236 = vlaneseq
  %v2237 = vshrl.u32 %v2236, 7
  %v2238 = vsub.s32 0, %v2237
  %v2239 = vrot.slane %v2234, %v2238
  %v2241 = vadd.f32 %v2233, %v2239
  %vm2242 = vcmask 7168
  %2243 = vst.msk [vmem:[%s9] sm:$0xff] %vm2242, %v2241
  // Predicated region
  $region38: #{predict_cases_forward.1} parent=0 // pred_check
    _
  $region39: #{predict_cases_forward.1} parent=0 // pred_check_branch
    %2245 = sbr.rel (0) target = $region41
  $region40: #{predict_cases_forward.1} parent=0 // pred_region
    _
  $region41: #{predict_cases_forward.1} parent=0 // pred_fallthru
    _
  // Predicated region
  $region42: #{predict_cases_forward.1} parent=0 // pred_check
    _
  $region43: #{predict_cases_forward.1} parent=0 // pred_check_branch
    %2247 = sbr.rel (0) target = $region45
  $region44: #{predict_cases_forward.1} parent=0 // pred_region
    _
  $region45: #{predict_cases_forward.1} parent=0 // pred_fallthru
    _

</llo_original>
